<compile_context>
chip_gen: v7x
topology: tpu7x:2x2x1
jax: 0.10.0
libtpu: 0.0.40
codegen_flags: <defaults>
</compile_context>

<pallas_src>
import functools

import jax
import jax.numpy as jnp
from jax import lax
from jax.experimental import pallas as pl
from jax.experimental.pallas import tpu as pltpu


def _round_up(x, m):
    return ((x + m - 1) // m) * m


@functools.lru_cache(maxsize=None)
def _tpu_hw():
    """Returns (vmem_capacity_bytes, tensorcores_per_chip) with safe defaults."""
    vmem = 64 * 1024 * 1024     # conservative (v7x per-TC capacity)
    cores = 1                   # conservative (v5e / v6e)
    try:
        info = pltpu.get_tpu_info()
        vmem = int(getattr(info, "vmem_capacity_bytes", vmem)) or vmem
        for attr in ("num_cores", "cores_per_chip", "tensorcores_per_chip",
                     "num_tensorcores", "core_count"):
            v = getattr(info, attr, None)
            if v:
                cores = int(v)
                break
    except Exception:
        pass
    return vmem, max(1, cores)


# ----------------------------------------------------------------------------- kernel
def _conv3x3_kernel(a_ref, b_ref, bias_ref, o_ref, *, act):
    """Whole 3x3 conv for one (row-tile, Cout-tile): three K=3*Cin MXU matmuls.

    a_ref    : (tm, 3*Cin)     bf16  dy-stacked (channel-major) padded input rows
    b_ref    : (3, 3*Cin, tn)  bf16  per-dx weight slabs (dy folded into K, BN folded)
    bias_ref : (1, tn)         f32   folded BN bias (zeros for plain convs)
    o_ref    : (tm, tn)        bf16
    """
    a = a_ref[...]                                           # (tm, 3*Cin) bf16
    acc = jnp.dot(a, b_ref[0], preferred_element_type=jnp.float32)
    for dx in (1, 2):                                        # column taps, unrolled
        p = jnp.dot(a, b_ref[dx], preferred_element_type=jnp.float32)
        # Output flat position k needs the dx tap at flat position k + dx: roll the
        # product up by dx rows.  The dx wrapped rows land only in the >=W
        # right-padding columns of the tile's last image row (Wp >= W + 2), which
        # the wrapper slices away, so no masking / zero-fill is needed.  jnp.roll
        # with a static shift lowers to a concat of two slices (no zeros tensor and
        # no scratch read-modify-write); pltpu.roll(p, tm-dx, axis=0) is the XLU
        # alternative.
        acc = acc + jnp.roll(p, -dx, axis=0)
    y = acc + bias_ref[...]
    if act == "relu":
        y = jnp.maximum(y, 0.0)
    elif act == "sigmoid":
        y = jax.nn.sigmoid(y)
    o_ref[...] = y.astype(o_ref.dtype)


def conv3x3_bn_act(x, w, bias, act="relu"):
    """3x3 conv (stride 1, pad 1, bias=False) + folded-BN bias + activation.

    x    : (N, H, W, Cin)     any float dtype (cast to bf16)
    w    : (3, 3, Cin, Cout)  HWIO, BN scale already folded into the Cout columns
    bias : (Cout,)            f32 folded BN bias (zeros for plain convs)
    """
    N, H, W, Cin = x.shape
    Cout = w.shape[-1]
    x = x.astype(jnp.bfloat16)
    w = w.astype(jnp.bfloat16)

    # Degenerate-channel padding: first layer Cin=3 -> 8; 1-wide head -> 128 lanes.
    cin_p = max(_round_up(Cin, 8), 8)
    if cin_p != Cin:
        x = jnp.pad(x, ((0, 0), (0, 0), (0, 0), (0, cin_p - Cin)))
        w = jnp.pad(w, ((0, 0), (0, 0), (0, cin_p - Cin), (0, 0)))
    cout_p = Cout if Cout >= 64 else 128
    if cout_p != Cout:
        w = jnp.pad(w, ((0, 0), (0, 0), (0, 0), (0, cout_p - Cout)))
        bias = jnp.pad(bias, ((0, cout_p - Cout),))
    Kin = 3 * cin_p

    # Pad 1 row top/bottom, 1 col left, and enough right columns that the padded
    # width is a multiple of 8 (keeps tiles (8,128)-friendly and gives the in-kernel
    # dx roll a discard zone).  The 3 dy taps are stacked along channels so the whole
    # conv is a single (M, 3*Cin) operand.
    Wp = _round_up(W + 2, 8)
    xp = jnp.pad(x, ((0, 0), (1, 1), (1, Wp - W - 1), (0, 0)))
    a = jnp.concatenate([xp[:, dy:dy + H] for dy in range(3)], axis=-1)
    rows = N * H
    M = rows * Wp
    a = a.reshape(M, Kin)

    # Weights: HWIO -> (dx, dy*Cin, Cout); K carries dy to match the activation order.
    b = jnp.transpose(w, (1, 0, 2, 3)).reshape(3, Kin, cout_p)
    bias2 = bias.reshape(1, cout_p).astype(jnp.float32)

    vmem_cap, cores = _tpu_hw()

    # Cout tiling: split 512-wide layers only when there are >=2 TensorCores to feed.
    tn = 256 if (cores >= 2 and cout_p > 256 and cout_p % 256 == 0) else cout_p
    n_ct = cout_p // tn

    # Row tiling: largest divisor of `rows` whose (conservative) working set fits the
    # generation-aware VMEM budget; keep >= `cores` row blocks when the Cout axis is
    # too narrow to occupy every core.
    budget = max(16 * 1024 * 1024, int(0.30 * vmem_cap))
    min_row_blocks = min(rows, cores) if (cores >= 2 and n_ct < cores) else 1

    def est_bytes(tm_):
        return (2 * (tm_ * Kin * 2 + 3 * Kin * tn * 2 + tn * 4 + tm_ * tn * 2)
                + 3 * tm_ * tn * 4          # f32 accumulator + rolled partials
                + 3 * Kin * tn * 2)         # weight operand temporaries (margin)

    tr = 1
    for cand in range(rows, 0, -1):
        if rows % cand or rows // cand < min_row_blocks:
            continue
        if est_bytes(cand * Wp) <= budget:
            tr = cand
            break
    tm = tr * Wp
    n_row = rows // tr
    vmem_limit = int(min(int(0.85 * vmem_cap),
                         max(est_bytes(tm) + 16 * 1024 * 1024, 32 * 1024 * 1024)))

    flops = 2 * 9 * M * cin_p * cout_p
    transcendentals = M * cout_p if act == "sigmoid" else 0
    bytes_accessed = (M * Kin * 2 + M * cout_p * 2
                      + 3 * Kin * cout_p * 2 * (n_row if n_ct > 1 else 1))

    out = pl.pallas_call(
        functools.partial(_conv3x3_kernel, act=act),
        out_shape=jax.ShapeDtypeStruct((M, cout_p), jnp.bfloat16),
        grid=(n_row, n_ct),
        in_specs=[
            pl.BlockSpec((tm, Kin), lambda i, j: (i, 0)),
            pl.BlockSpec((3, Kin, tn), lambda i, j: (0, 0, j)),
            pl.BlockSpec((1, tn), lambda i, j: (0, j)),
        ],
        out_specs=pl.BlockSpec((tm, tn), lambda i, j: (i, j)),
        compiler_params=pltpu.CompilerParams(
            dimension_semantics=("parallel", "parallel"),
            vmem_limit_bytes=vmem_limit,
        ),
        cost_estimate=pl.CostEstimate(
            flops=int(flops),
            transcendentals=int(transcendentals),
            bytes_accessed=int(bytes_accessed)),
    )(a, b, bias2)

    # drop the per-row right-padding columns / padded channels and restore NHWC
    return out.reshape(N, H, Wp, cout_p)[:, :, :W, :Cout]


# ----------------------------------------------------------------------------- glue ops
def max_pool(x, k):
    """MaxPool2d(k, k, ceil_mode=True) on NHWC."""
    N, H, W, C = x.shape
    Ho, Wo = -(-H // k), -(-W // k)
    ph, pw = Ho * k - H, Wo * k - W
    if ph or pw:
        x = jnp.pad(x, ((0, 0), (0, ph), (0, pw), (0, 0)), constant_values=-jnp.inf)
    return x.reshape(N, Ho, k, Wo, k, C).max(axis=(2, 4))


def upsample_bilinear(x, s):
    """nn.Upsample(scale_factor=s, mode='bilinear', align_corners=False), bf16."""
    N, H, W, C = x.shape
    return jax.image.resize(x, (N, H * s, W * s, C), method="bilinear")


# ----------------------------------------------------------------------------- params
def _init_cba(key, cin, cout):
    kw, kg, kb, km, kv = jax.random.split(key, 5)
    w = jax.random.normal(kw, (3, 3, cin, cout), jnp.float32) / jnp.sqrt(9.0 * cin)
    gamma = 1.0 + 0.1 * jax.random.normal(kg, (cout,), jnp.float32)
    beta = 0.1 * jax.random.normal(kb, (cout,), jnp.float32)
    mean = 0.1 * jax.random.normal(km, (cout,), jnp.float32)
    var = 1.0 + 0.1 * jnp.abs(jax.random.normal(kv, (cout,), jnp.float32))
    scale = gamma / jnp.sqrt(var + 1e-5)              # folded BN (eval mode)
    bias = beta - mean * scale
    return {"w": (w * scale[None, None, None, :]).astype(jnp.bfloat16),
            "bias": bias.astype(jnp.float32)}


def _block_diag_cba(branches):
    """Fuse independent per-branch ConvBNAct params into one block-diagonal conv."""
    cin_tot = sum(int(b["w"].shape[2]) for b in branches)
    cout_tot = sum(int(b["w"].shape[3]) for b in branches)
    w = jnp.zeros((3, 3, cin_tot, cout_tot), jnp.bfloat16)
    io = oo = 0
    for b in branches:
        ci, co = int(b["w"].shape[2]), int(b["w"].shape[3])
        w = w.at[:, :, io:io + ci, oo:oo + co].set(b["w"])
        io += ci
        oo += co
    bias = jnp.concatenate([b["bias"] for b in branches]).astype(jnp.float32)
    return {"w": w, "bias": bias}


def build_params(seed=0):
    key = jax.random.PRNGKey(seed)
    cc = 64
    c5 = 5 * cc

    def nxt():
        nonlocal key
        key, sub = jax.random.split(key)
        return sub

    params = {}
    vgg = [("v1_1", 3, 64), ("v1_2", 64, 64),
           ("v2_1", 64, 128), ("v2_2", 128, 128),
           ("v3_1", 128, 256), ("v3_2", 256, 256), ("v3_3", 256, 256),
           ("v4_1", 256, 512), ("v4_2", 512, 512), ("v4_3", 512, 512),
           ("v5_1", 512, 512), ("v5_2", 512, 512), ("v5_3", 512, 512)]
    for name, ci, co in vgg:
        params[name] = _init_cba(nxt(), ci, co)

    # Fusion head: the five 64-channel branch convs at each level are stored fused as
    # one block-diagonal conv over the channel-concatenated (pooled/upsampled) inputs.
    level_in = {5: [512, 512, 256, 128, 64],
                4: [c5, 512, 256, 128, 64],
                3: [c5, c5, 256, 128, 64],
                2: [c5, c5, c5, 128, 64],
                1: [c5, c5, c5, c5, 64]}
    for lvl in (5, 4, 3, 2, 1):
        branches = [_init_cba(nxt(), ci, cc) for ci in level_in[lvl]]
        params[f"f{lvl}"] = _block_diag_cba(branches)
        params[f"o{lvl}"] = _init_cba(nxt(), c5, c5)

    params["down_channel"] = {
        "w": (jax.random.normal(nxt(), (3, 3, c5, 64), jnp.float32)
              / jnp.sqrt(9.0 * c5)).astype(jnp.bfloat16),
        "bias": jnp.zeros((64,), jnp.float32)}
    params["gen_final"] = {
        "w": (jax.random.normal(nxt(), (3, 3, 64, 1), jnp.float32)
              / jnp.sqrt(9.0 * 64)).astype(jnp.bfloat16),
        "bias": jnp.zeros((1,), jnp.float32)}
    return params


# ----------------------------------------------------------------------------- model
def _cba(x, pp, act="relu"):
    return conv3x3_bn_act(x, pp["w"], pp["bias"], act=act)


def _cba_ref(x, pp, act="relu"):
    """XLA reference ConvBNAct with the same bf16/f32 dtype policy as the kernel."""
    y = lax.conv_general_dilated(
        x.astype(jnp.bfloat16), pp["w"].astype(jnp.bfloat16), (1, 1), ((1, 1), (1, 1)),
        dimension_numbers=("NHWC", "HWIO", "NHWC"),
        preferred_element_type=jnp.float32)
    y = y + pp["bias"].reshape(1, 1, 1, -1)
    if act == "relu":
        y = jnp.maximum(y, 0.0)
    elif act == "sigmoid":
        y = jax.nn.sigmoid(y)
    return y.astype(jnp.bfloat16)


def _forward_impl(params, x_nchw, cba):
    p = params
    x = jnp.transpose(x_nchw, (0, 2, 3, 1)).astype(jnp.bfloat16)  # NCHW -> NHWC bf16

    # VGG16-bn feature stages
    x1 = cba(cba(x, p["v1_1"]), p["v1_2"])
    x2 = cba(cba(max_pool(x1, 2), p["v2_1"]), p["v2_2"])
    x3 = cba(cba(cba(max_pool(x2, 2), p["v3_1"]), p["v3_2"]), p["v3_3"])
    x4 = cba(cba(cba(max_pool(x3, 2), p["v4_1"]), p["v4_2"]), p["v4_3"])
    x5 = cba(cba(cba(max_pool(x4, 2), p["v5_1"]), p["v5_2"]), p["v5_3"])

    cat = lambda xs: jnp.concatenate(xs, axis=-1)
    up = upsample_bilinear

    # fusion levels (five branch convs fused into one block-diagonal conv per level)
    o5 = cba(cba(cat([x5, max_pool(x4, 2), max_pool(x3, 4),
                      max_pool(x2, 8), max_pool(x1, 16)]), p["f5"]), p["o5"])
    o4 = cba(cba(cat([up(o5, 2), x4, max_pool(x3, 2),
                      max_pool(x2, 4), max_pool(x1, 8)]), p["f4"]), p["o4"])
    o3 = cba(cba(cat([up(o5, 4), up(o4, 2), x3,
                      max_pool(x2, 2), max_pool(x1, 4)]), p["f3"]), p["o3"])
    o2 = cba(cba(cat([up(o5, 8), up(o4, 4), up(o3, 2),
                      x2, max_pool(x1, 2)]), p["f2"]), p["o2"])
    o1 = cba(cba(cat([up(o5, 16), up(o4, 8), up(o3, 4),
                      up(o2, 2), x1]), p["f1"]), p["o1"])

    # head: down_channel -> gen_final_feat -> sigmoid (both plain convs, bias=False)
    y = cba(o1, p["down_channel"], act="none")
    y = cba(y, p["gen_final"], act="sigmoid")
    return jnp.transpose(y, (0, 3, 1, 2)).astype(jnp.float32)     # NHWC -> NCHW


def my_model_forward(params, x_nchw):
    return _forward_impl(params, x_nchw, _cba)


def my_model_forward_ref(params, x_nchw):
    return _forward_impl(params, x_nchw, _cba_ref)


# ----------------------------------------------------------------------------- main
if __name__ == "__main__":
    # -- unit checks: Pallas conv vs XLA conv (covers Cin-pad, Cout-pad, act paths) --
    def _check_conv(cin, cout, act, hw=12, n=2, seed=1):
        kx, kw_, kb = jax.random.split(jax.random.PRNGKey(seed), 3)
        xs = jax.random.normal(kx, (n, hw, hw, cin), jnp.float32).astype(jnp.bfloat16)
        ws = (0.1 * jax.random.normal(kw_, (3, 3, cin, cout), jnp.float32)
              ).astype(jnp.bfloat16)
        bs = 0.1 * jax.random.normal(kb, (cout,), jnp.float32)
        got = jax.jit(functools.partial(conv3x3_bn_act, act=act))(xs, ws, bs)
        got = got.astype(jnp.float32)
        ref = lax.conv_general_dilated(
            xs.astype(jnp.float32), ws.astype(jnp.float32), (1, 1), ((1, 1), (1, 1)),
            dimension_numbers=("NHWC", "HWIO", "NHWC"))
        ref = ref + bs.reshape(1, 1, 1, -1)
        if act == "relu":
            ref = jnp.maximum(ref, 0.0)
        elif act == "sigmoid":
            ref = jax.nn.sigmoid(ref)
        err = float(jnp.max(jnp.abs(got - ref)))
        assert bool(jnp.allclose(got, ref, atol=5e-2, rtol=5e-2)), (cin, cout, act, err)

    _check_conv(16, 32, "relu")     # general path
    _check_conv(3, 64, "relu")      # Cin-padding path (first VGG layer)
    _check_conv(64, 1, "sigmoid")   # Cout-padding path (head) + sigmoid

    # -- full model --
    x = jax.random.normal(jax.random.PRNGKey(0), (1, 3, 32, 32), jnp.float32)  # NCHW
    params = build_params(seed=0)

    out = jax.block_until_ready(jax.jit(my_model_forward)(params, x))
    assert out.shape == (1, 1, 32, 32), out.shape
    assert bool(jnp.all(jnp.isfinite(out)))
    assert bool(jnp.all(out >= 0.0)) and bool(jnp.all(out <= 1.0))  # sigmoid output

    # end-to-end check vs an XLA-conv reference that uses the identical bf16 glue
    ref_out = jax.block_until_ready(jax.jit(my_model_forward_ref)(params, x))
    e2e_err = float(jnp.max(jnp.abs(out - ref_out)))
    assert e2e_err < 0.15, e2e_err

    print("KERNEL_OK")
</pallas_src>

<mosaic_0001>
module attributes {stable_mosaic.version = 11 : i64} {
  func.func @_conv3x3_kernel(%arg0: i32, %arg1: i32, %arg2: memref<384x48xbf16, #tpu.memory_space<vmem>>, %arg3: memref<3x48x128xbf16, #tpu.memory_space<vmem>>, %arg4: memref<1x128xf32, #tpu.memory_space<vmem>>, %arg5: memref<384x128xbf16, #tpu.memory_space<vmem>>) attributes {dimension_semantics = [#tpu.dimension_semantics<parallel>, #tpu.dimension_semantics<parallel>], iteration_bounds = array<i64: 1, 1>, scalar_prefetch = 0 : i64, scratch_operands = 0 : i64, tpu.core_type = #tpu.core_type<tc>, window_params = [{transform_indices = @transform_0, window_bounds = array<i64: 384, 48>}, {transform_indices = @transform_1, window_bounds = array<i64: 3, 48, 128>}, {transform_indices = @transform_2, window_bounds = array<i64: 1, 128>}, {transform_indices = @transform_3, window_bounds = array<i64: 384, 128>}]} {
    %c0 = arith.constant 0 : index
    %c0_0 = arith.constant 0 : index
    %0 = vector.load %arg2[%c0, %c0_0] : memref<384x48xbf16, #tpu.memory_space<vmem>>, vector<384x48xbf16>
    %c0_1 = arith.constant 0 : index
    %c0_2 = arith.constant 0 : index
    %c0_3 = arith.constant 0 : index
    %1 = vector.load %arg3[%c0_1, %c0_2, %c0_3] : memref<3x48x128xbf16, #tpu.memory_space<vmem>>, vector<1x48x128xbf16>
    %2 = vector.shape_cast %1 : vector<1x48x128xbf16> to vector<48x128xbf16>
    %cst = arith.constant dense<0.000000e+00> : vector<384x128xf32>
    %3 = tpu.matmul %0, %2, %cst {dimension_numbers = #tpu.dot_dimension_numbers<[1], [0], [0], [1], [0, 0, 1, 1], [], []>} : vector<384x48xbf16>, vector<48x128xbf16>, vector<384x128xf32> -> vector<384x128xf32>
    %c1 = arith.constant 1 : index
    %c0_4 = arith.constant 0 : index
    %c0_5 = arith.constant 0 : index
    %4 = vector.load %arg3[%c1, %c0_4, %c0_5] : memref<3x48x128xbf16, #tpu.memory_space<vmem>>, vector<1x48x128xbf16>
    %5 = vector.shape_cast %4 : vector<1x48x128xbf16> to vector<48x128xbf16>
    %cst_6 = arith.constant dense<0.000000e+00> : vector<384x128xf32>
    %6 = tpu.matmul %0, %5, %cst_6 {dimension_numbers = #tpu.dot_dimension_numbers<[1], [0], [0], [1], [0, 0, 1, 1], [], []>} : vector<384x48xbf16>, vector<48x128xbf16>, vector<384x128xf32> -> vector<384x128xf32>
    %7 = vector.extract_strided_slice %6 {offsets = [1, 0], sizes = [383, 128], strides = [1, 1]} : vector<384x128xf32> to vector<383x128xf32>
    %8 = vector.extract_strided_slice %6 {offsets = [0, 0], sizes = [1, 128], strides = [1, 1]} : vector<384x128xf32> to vector<1x128xf32>
    %9 = tpu.concatenate %7, %8 in 0 : vector<383x128xf32>, vector<1x128xf32> -> vector<384x128xf32>
    %10 = arith.addf %3, %9 : vector<384x128xf32>
    %c2 = arith.constant 2 : index
    %c0_7 = arith.constant 0 : index
    %c0_8 = arith.constant 0 : index
    %11 = vector.load %arg3[%c2, %c0_7, %c0_8] : memref<3x48x128xbf16, #tpu.memory_space<vmem>>, vector<1x48x128xbf16>
    %12 = vector.shape_cast %11 : vector<1x48x128xbf16> to vector<48x128xbf16>
    %cst_9 = arith.constant dense<0.000000e+00> : vector<384x128xf32>
    %13 = tpu.matmul %0, %12, %cst_9 {dimension_numbers = #tpu.dot_dimension_numbers<[1], [0], [0], [1], [0, 0, 1, 1], [], []>} : vector<384x48xbf16>, vector<48x128xbf16>, vector<384x128xf32> -> vector<384x128xf32>
    %14 = vector.extract_strided_slice %13 {offsets = [2, 0], sizes = [382, 128], strides = [1, 1]} : vector<384x128xf32> to vector<382x128xf32>
    %15 = vector.extract_strided_slice %13 {offsets = [0, 0], sizes = [2, 128], strides = [1, 1]} : vector<384x128xf32> to vector<2x128xf32>
    %16 = tpu.concatenate %14, %15 in 0 : vector<382x128xf32>, vector<2x128xf32> -> vector<384x128xf32>
    %17 = arith.addf %10, %16 : vector<384x128xf32>
    %c0_10 = arith.constant 0 : index
    %c0_11 = arith.constant 0 : index
    %18 = vector.load %arg4[%c0_10, %c0_11] : memref<1x128xf32, #tpu.memory_space<vmem>>, vector<1x128xf32>
    %19 = vector.broadcast %18 : vector<1x128xf32> to vector<384x128xf32>
    %20 = arith.addf %17, %19 : vector<384x128xf32>
    %cst_12 = arith.constant 0.000000e+00 : f32
    %21 = vector.broadcast %cst_12 : f32 to vector<384x128xf32>
    %22 = arith.maximumf %20, %21 : vector<384x128xf32>
    %23 = arith.truncf %22 : vector<384x128xf32> to vector<384x128xbf16>
    %c0_13 = arith.constant 0 : index
    %c0_14 = arith.constant 0 : index
    %24 = vector.load %arg5[%c0_13, %c0_14] : memref<384x128xbf16, #tpu.memory_space<vmem>>, vector<384x128xbf16>
    tpu.vector_store %arg5[%c0_13, %c0_14], %23 {strides = array<i32>} : memref<384x128xbf16, #tpu.memory_space<vmem>>, vector<384x128xbf16>,
    return
  }
  func.func @transform_0(%arg0: i32, %arg1: i32) -> (i32, i32) {
    %c0_i32 = arith.constant 0 : i32
    %c0_i32_0 = arith.constant 0 : i32
    return %arg0, %c0_i32 : i32, i32
  }
  func.func @transform_1(%arg0: i32, %arg1: i32) -> (i32, i32, i32) {
    %c0_i32 = arith.constant 0 : i32
    %c0_i32_0 = arith.constant 0 : i32
    %c0_i32_1 = arith.constant 0 : i32
    return %c0_i32, %c0_i32_0, %arg1 : i32, i32, i32
  }
  func.func @transform_2(%arg0: i32, %arg1: i32) -> (i32, i32) {
    %c0_i32 = arith.constant 0 : i32
    %c0_i32_0 = arith.constant 0 : i32
    return %c0_i32, %arg1 : i32, i32
  }
  func.func @transform_3(%arg0: i32, %arg1: i32) -> (i32, i32) {
    %c0_i32 = arith.constant 0 : i32
    return %arg0, %arg1 : i32, i32
  }
}

</mosaic_0001>

<llo_original>
// kernel: conv3x3_bn_act.1
$region0: #{conv3x3_bn_act.1}
  #allocation0 [shape = 'u32[]', space=smem, size = 0x4, offset = 0x4, fixed_abs, tag = 'smem constant byte address 0x4 - core index']
  #allocation1 [shape = 'u32[144,128]{1,0:T(1,128)}', space=vmem, size = 0x12000, scoped, tag = 'internal scratch']
  %s0 = inlined_call_operand.vmem [shape: bf16[384,48], index: 0, kind: input, shape index: {}]
  %s1 = inlined_call_operand.vmem [shape: bf16[3,48,128], index: 1, kind: input, shape index: {}]
  %s2 = inlined_call_operand.vmem [shape: f32[1,128], index: 2, kind: input, shape index: {}]
  %s3 = inlined_call_operand.vmem [shape: bf16[384,128], index: 3, kind: output, shape index: {}]
  %s4 = sld [smem:[#allocation0]]
  $region22: #{conv3x3_bn_act.1} parent=0
    _
  %s6 = ssub.s32 1, %s4
  %s7 = scalar_select 0, %s6, %s4
  // Predicated region
  $region2: #{conv3x3_bn_act.1} parent=0 // pred_check
    _
  $region3: #{conv3x3_bn_act.1} parent=0 // pred_check_branch
    %9 = sbr.rel (0) target = $region5
  $region4: #{conv3x3_bn_act.1} parent=0 // pred_region
    _
  $region5: #{conv3x3_bn_act.1} parent=0 // pred_fallthru
    _
  // Predicated region
  $region6: #{conv3x3_bn_act.1} parent=0 // pred_check
    _
  $region7: #{conv3x3_bn_act.1} parent=0 // pred_check_branch
    %11 = sbr.rel (0) target = $region9
  $region8: #{conv3x3_bn_act.1} parent=0 // pred_region
    _
  $region9: #{conv3x3_bn_act.1} parent=0 // pred_fallthru
    _
  // Predicated region
  $region10: #{conv3x3_bn_act.1} parent=0 // pred_check
    _
  $region11: #{conv3x3_bn_act.1} parent=0 // pred_check_branch
    %13 = sbr.rel (0) target = $region13
  $region12: #{conv3x3_bn_act.1} parent=0 // pred_region
    _
  $region13: #{conv3x3_bn_act.1} parent=0 // pred_fallthru
    _
  %v15 = vld [vmem:[%s0] sm:$0xf]
  %v16 = vld [vmem:[%s0 + $0x4] sm:$0xf]
  %v17 = vld [vmem:[%s0 + $0x8] sm:$0xf]
  %v18 = vld [vmem:[%s0 + $0xc] sm:$0xf]
  %v19 = vld [vmem:[%s0 + $0x10] sm:$0xf]
  %v20 = vld [vmem:[%s0 + $0x14] sm:$0xf]
  %v21 = vld [vmem:[%s0 + $0x18] sm:$0xf]
  %v22 = vld [vmem:[%s0 + $0x1c] sm:$0xf]
  %v23 = vld [vmem:[%s0 + $0x20] sm:$0xf]
  %v24 = vld [vmem:[%s0 + $0x24] sm:$0xf]
  %v25 = vld [vmem:[%s0 + $0x28] sm:$0xf]
  %v26 = vld [vmem:[%s0 + $0x2c] sm:$0xf]
  %v27 = vld [vmem:[%s0 + $0x30] sm:$0xf]
  %v28 = vld [vmem:[%s0 + $0x34] sm:$0xf]
  %v29 = vld [vmem:[%s0 + $0x38] sm:$0xf]
  %v30 = vld [vmem:[%s0 + $0x3c] sm:$0xf]
  %v31 = vld [vmem:[%s0 + $0x40] sm:$0xf]
  %v32 = vld [vmem:[%s0 + $0x44] sm:$0xf]
  %v33 = vld [vmem:[%s0 + $0x48] sm:$0xf]
  %v34 = vld [vmem:[%s0 + $0x4c] sm:$0xf]
  %v35 = vld [vmem:[%s0 + $0x50] sm:$0xf]
  %v36 = vld [vmem:[%s0 + $0x54] sm:$0xf]
  %v37 = vld [vmem:[%s0 + $0x58] sm:$0xf]
  %v38 = vld [vmem:[%s0 + $0x5c] sm:$0xf]
  %v39 = vld [vmem:[%s0 + $0x60] sm:$0xf]
  %v40 = vld [vmem:[%s0 + $0x64] sm:$0xf]
  %v41 = vld [vmem:[%s0 + $0x68] sm:$0xf]
  %v42 = vld [vmem:[%s0 + $0x6c] sm:$0xf]
  %v43 = vld [vmem:[%s0 + $0x70] sm:$0xf]
  %v44 = vld [vmem:[%s0 + $0x74] sm:$0xf]
  %v45 = vld [vmem:[%s0 + $0x78] sm:$0xf]
  %v46 = vld [vmem:[%s0 + $0x7c] sm:$0xf]
  %v47 = vld [vmem:[%s0 + $0x80] sm:$0xf]
  %v48 = vld [vmem:[%s0 + $0x84] sm:$0xf]
  %v49 = vld [vmem:[%s0 + $0x88] sm:$0xf]
  %v50 = vld [vmem:[%s0 + $0x8c] sm:$0xf]
  %v51 = vld [vmem:[%s0 + $0x90] sm:$0xf]
  %v52 = vld [vmem:[%s0 + $0x94] sm:$0xf]
  %v53 = vld [vmem:[%s0 + $0x98] sm:$0xf]
  %v54 = vld [vmem:[%s0 + $0x9c] sm:$0xf]
  %v55 = vld [vmem:[%s0 + $0xa0] sm:$0xf]
  %v56 = vld [vmem:[%s0 + $0xa4] sm:$0xf]
  %v57 = vld [vmem:[%s0 + $0xa8] sm:$0xf]
  %v58 = vld [vmem:[%s0 + $0xac] sm:$0xf]
  %v59 = vld [vmem:[%s0 + $0xb0] sm:$0xf]
  %v60 = vld [vmem:[%s0 + $0xb4] sm:$0xf]
  %v61 = vld [vmem:[%s0 + $0xb8] sm:$0xf]
  %v62 = vld [vmem:[%s0 + $0xbc] sm:$0xf]
  %v63 = vld [vmem:[%s1] sm:$0xf]
  %v64 = vld [vmem:[%s1 + $0x4] sm:$0xf]
  %v65 = vld [vmem:[%s1 + $0x8] sm:$0xf]
  %v66 = vld [vmem:[%s1 + $0xc] sm:$0xf]
  %v67 = vld [vmem:[%s1 + $0x10] sm:$0xf]
  %v68 = vld [vmem:[%s1 + $0x14] sm:$0xf]
  %s69 = scalar_lea.vmem %s1, 24
  %v70 = vld [vmem:[%s69] sm:$0xf]
  %v71 = vld [vmem:[%s69 + $0x4] sm:$0xf]
  %v72 = vld [vmem:[%s69 + $0x8] sm:$0xf]
  %v73 = vld [vmem:[%s69 + $0xc] sm:$0xf]
  %v74 = vld [vmem:[%s69 + $0x10] sm:$0xf]
  %v75 = vld [vmem:[%s69 + $0x14] sm:$0xf]
  %v124 = vunpack.c.l.b16 %v15
  %v125 = vunpack.c.l.b16 %v16
  %v126 = vunpack.c.l.b16 %v17
  %v127 = vunpack.c.l.b16 %v18
  %v128 = vunpack.c.l.b16 %v19
  %v129 = vunpack.c.l.b16 %v20
  %v130 = vunpack.c.l.b16 %v21
  %v131 = vunpack.c.l.b16 %v22
  %v132 = vunpack.c.l.b16 %v23
  %v133 = vunpack.c.l.b16 %v24
  %v134 = vunpack.c.l.b16 %v25
  %v135 = vunpack.c.l.b16 %v26
  %v136 = vunpack.c.l.b16 %v27
  %v137 = vunpack.c.l.b16 %v28
  %v138 = vunpack.c.l.b16 %v29
  %v139 = vunpack.c.l.b16 %v30
  %v140 = vunpack.c.l.b16 %v31
  %v141 = vunpack.c.l.b16 %v32
  %v142 = vunpack.c.l.b16 %v33
  %v143 = vunpack.c.l.b16 %v34
  %v144 = vunpack.c.l.b16 %v35
  %v145 = vunpack.c.l.b16 %v36
  %v146 = vunpack.c.l.b16 %v37
  %v147 = vunpack.c.l.b16 %v38
  %v148 = vunpack.c.l.b16 %v39
  %v149 = vunpack.c.l.b16 %v40
  %v150 = vunpack.c.l.b16 %v41
  %v151 = vunpack.c.l.b16 %v42
  %v152 = vunpack.c.l.b16 %v43
  %v153 = vunpack.c.l.b16 %v44
  %v154 = vunpack.c.l.b16 %v45
  %v155 = vunpack.c.l.b16 %v46
  %v156 = vunpack.c.l.b16 %v47
  %v157 = vunpack.c.l.b16 %v48
  %v158 = vunpack.c.l.b16 %v49
  %v159 = vunpack.c.l.b16 %v50
  %v160 = vunpack.c.l.b16 %v51
  %v161 = vunpack.c.l.b16 %v52
  %v162 = vunpack.c.l.b16 %v53
  %v163 = vunpack.c.l.b16 %v54
  %v164 = vunpack.c.l.b16 %v55
  %v165 = vunpack.c.l.b16 %v56
  %v166 = vunpack.c.l.b16 %v57
  %v167 = vunpack.c.l.b16 %v58
  %v168 = vunpack.c.l.b16 %v59
  %v169 = vunpack.c.l.b16 %v60
  %v170 = vunpack.c.l.b16 %v61
  %v171 = vunpack.c.l.b16 %v62
  %v172 = vpack.c.b16 %v125, %v124
  %v173 = vpack.c.b16 %v127, %v126
  %v174 = vpack.c.b16 %v129, %v128
  %v175 = vpack.c.b16 %v131, %v130
  %v176 = vpack.c.b16 %v133, %v132
  %v177 = vpack.c.b16 %v135, %v134
  %v178 = vpack.c.b16 %v137, %v136
  %v179 = vpack.c.b16 %v139, %v138
  %v180 = vpack.c.b16 %v141, %v140
  %v181 = vpack.c.b16 %v143, %v142
  %v182 = vpack.c.b16 %v145, %v144
  %v183 = vpack.c.b16 %v147, %v146
  %v184 = vpack.c.b16 %v149, %v148
  %v185 = vpack.c.b16 %v151, %v150
  %v186 = vpack.c.b16 %v153, %v152
  %v187 = vpack.c.b16 %v155, %v154
  %v188 = vpack.c.b16 %v157, %v156
  %v189 = vpack.c.b16 %v159, %v158
  %v190 = vpack.c.b16 %v161, %v160
  %v191 = vpack.c.b16 %v163, %v162
  %v192 = vpack.c.b16 %v165, %v164
  %v193 = vpack.c.b16 %v167, %v166
  %v194 = vpack.c.b16 %v169, %v168
  %v195 = vpack.c.b16 %v171, %v170
  %v202 = vunpack.c.l.b16 %v70
  %v203 = vunpack.c.l.b16 %v71
  %v204 = vunpack.c.l.b16 %v72
  %v205 = vunpack.c.l.b16 %v73
  %v206 = vunpack.c.l.b16 %v74
  %v207 = vunpack.c.l.b16 %v75
  %v208 = vpack.c.b16 %v203, %v202
  %v209 = vpack.c.b16 %v205, %v204
  %v210 = vpack.c.b16 %v207, %v206
  %vm214 = vcmask 392192
  %v216 = vsel %vm214, %v172, 0
  %v219 = vsel %vm214, %v173, 0
  %v222 = vsel %vm214, %v174, 0
  %v225 = vsel %vm214, %v175, 0
  %v228 = vsel %vm214, %v176, 0
  %v231 = vsel %vm214, %v177, 0
  %v234 = vsel %vm214, %v178, 0
  %v237 = vsel %vm214, %v179, 0
  %v240 = vsel %vm214, %v180, 0
  %v243 = vsel %vm214, %v181, 0
  %v246 = vsel %vm214, %v182, 0
  %v249 = vsel %vm214, %v183, 0
  %v252 = vsel %vm214, %v184, 0
  %v255 = vsel %vm214, %v185, 0
  %v258 = vsel %vm214, %v186, 0
  %v261 = vsel %vm214, %v187, 0
  %v264 = vsel %vm214, %v188, 0
  %v267 = vsel %vm214, %v189, 0
  %v270 = vsel %vm214, %v190, 0
  %v273 = vsel %vm214, %v191, 0
  %v276 = vsel %vm214, %v192, 0
  %v279 = vsel %vm214, %v193, 0
  %v282 = vsel %vm214, %v194, 0
  %v285 = vsel %vm214, %v195, 0
  %287 = vmatprep.subr.bf16.mxu0 0
  %288 = vmatpush1.bf16.msra.mxu0 %v208
  %289 = vmatprep.subr.bf16.mxu0 0
  %290 = vmatpush1.bf16.msra.mxu0 %v209
  %291 = vmatprep.subr.bf16.mxu0 0
  %292 = vmatpush1.bf16.msra.mxu0 %v210
  %293 = vmatprep.subr.bf16.mxu0 0
  %294 = vmatpush1.bf16.msra.mxu0 0
  %295 = vmatprep.subr.bf16.mxu0 0
  %296 = vmatpush1.bf16.msra.mxu0 0
  %297 = vmatprep.subr.bf16.mxu0 0
  %298 = vmatpush1.bf16.msra.mxu0 0
  %299 = vmatprep.subr.bf16.mxu0 0
  %300 = vmatpush1.bf16.msra.mxu0 0
  %301 = vmatprep.subr.bf16.mxu0 0
  %302 = vmatpush1.bf16.msra.mxu0 0
  %303 = vmatprep.subr.bf16.mxu0 0
  %304 = vmatpush1.bf16.msra.mxu0 0
  %305 = vmatprep.subr.bf16.mxu0 0
  %306 = vmatpush1.bf16.msra.mxu0 0
  %307 = vmatprep.subr.bf16.mxu0 0
  %308 = vmatpush1.bf16.msra.mxu0 0
  %309 = vmatprep.subr.bf16.mxu0 0
  %310 = vmatpush1.bf16.msra.mxu0 0
  %311 = vmatprep.subr.bf16.mxu0 0
  %312 = vmatpush1.bf16.msra.mxu0 0
  %313 = vmatprep.subr.bf16.mxu0 0
  %314 = vmatpush1.bf16.msra.mxu0 0
  %315 = vmatprep.subr.bf16.mxu0 0
  %316 = vmatpush1.bf16.msra.mxu0 0
  %317 = vmatprep.subr.bf16.mxu0 0
  %318 = vmatpush1.bf16.msra.mxu0 0
  %319 = vmatprep.mubr.bf16.mxu0 0
  %320 = vmatmul.mubr.bf16.gmra.mrb[0].mxu0 %v216
  %v321 = vpop.f32.mrb[0].mxu0
  %v322 = vadd.f32 0.0, %v321
  %v323 = vpop.f32.mrb[0].mxu0
  %v324 = vpop.f32.mrb[0].mxu0
  %v325 = vadd.f32 0.0, %v324
  %v326 = vpop.f32.mrb[0].mxu0
  %327 = vmatprep.mubr.bf16.mxu0 0
  %328 = vmatmul.mubr.bf16.gmra.mrb[0].mxu0 %v219
  %v329 = vpop.f32.mrb[0].mxu0
  %v330 = vadd.f32 0.0, %v329
  %v331 = vpop.f32.mrb[0].mxu0
  %v332 = vpop.f32.mrb[0].mxu0
  %v333 = vadd.f32 0.0, %v332
  %v334 = vpop.f32.mrb[0].mxu0
  %335 = vmatprep.mubr.bf16.mxu0 0
  %336 = vmatmul.mubr.bf16.gmra.mrb[0].mxu0 %v222
  %v337 = vpop.f32.mrb[0].mxu0
  %v338 = vadd.f32 0.0, %v337
  %v339 = vpop.f32.mrb[0].mxu0
  %v340 = vpop.f32.mrb[0].mxu0
  %v341 = vadd.f32 0.0, %v340
  %v342 = vpop.f32.mrb[0].mxu0
  %343 = vmatprep.mubr.bf16.mxu0 0
  %344 = vmatmul.mubr.bf16.gmra.mrb[0].mxu0 %v225
  %v345 = vpop.f32.mrb[0].mxu0
  %v346 = vadd.f32 0.0, %v345
  %v347 = vpop.f32.mrb[0].mxu0
  %v348 = vpop.f32.mrb[0].mxu0
  %v349 = vadd.f32 0.0, %v348
  %v350 = vpop.f32.mrb[0].mxu0
  %351 = vmatprep.mubr.bf16.mxu0 0
  %352 = vmatmul.mubr.bf16.gmra.mrb[0].mxu0 %v228
  %v353 = vpop.f32.mrb[0].mxu0
  %v354 = vadd.f32 0.0, %v353
  %v355 = vpop.f32.mrb[0].mxu0
  %v356 = vpop.f32.mrb[0].mxu0
  %v357 = vadd.f32 0.0, %v356
  %v358 = vpop.f32.mrb[0].mxu0
  %359 = vmatprep.mubr.bf16.mxu0 0
  %360 = vmatmul.mubr.bf16.gmra.mrb[0].mxu0 %v231
  %v361 = vpop.f32.mrb[0].mxu0
  %v362 = vadd.f32 0.0, %v361
  %v363 = vpop.f32.mrb[0].mxu0
  %v364 = vpop.f32.mrb[0].mxu0
  %v365 = vadd.f32 0.0, %v364
  %v366 = vpop.f32.mrb[0].mxu0
  %367 = vmatprep.mubr.bf16.mxu0 0
  %368 = vmatmul.mubr.bf16.gmra.mrb[0].mxu0 %v234
  %v369 = vpop.f32.mrb[0].mxu0
  %v370 = vadd.f32 0.0, %v369
  %v371 = vpop.f32.mrb[0].mxu0
  %v372 = vpop.f32.mrb[0].mxu0
  %v373 = vadd.f32 0.0, %v372
  %v374 = vpop.f32.mrb[0].mxu0
  %375 = vmatprep.mubr.bf16.mxu0 0
  %376 = vmatmul.mubr.bf16.gmra.mrb[0].mxu0 %v237
  %v377 = vpop.f32.mrb[0].mxu0
  %v378 = vadd.f32 0.0, %v377
  %v379 = vpop.f32.mrb[0].mxu0
  %v380 = vpop.f32.mrb[0].mxu0
  %v381 = vadd.f32 0.0, %v380
  %v382 = vpop.f32.mrb[0].mxu0
  %383 = vmatprep.mubr.bf16.mxu0 0
  %384 = vmatmul.mubr.bf16.gmra.mrb[0].mxu0 %v240
  %v385 = vpop.f32.mrb[0].mxu0
  %v386 = vadd.f32 0.0, %v385
  %v387 = vpop.f32.mrb[0].mxu0
  %v388 = vpop.f32.mrb[0].mxu0
  %v389 = vadd.f32 0.0, %v388
  %v390 = vpop.f32.mrb[0].mxu0
  %391 = vmatprep.mubr.bf16.mxu0 0
  %392 = vmatmul.mubr.bf16.gmra.mrb[0].mxu0 %v243
  %v393 = vpop.f32.mrb[0].mxu0
  %v394 = vadd.f32 0.0, %v393
  %v395 = vpop.f32.mrb[0].mxu0
  %v396 = vpop.f32.mrb[0].mxu0
  %v397 = vadd.f32 0.0, %v396
  %v398 = vpop.f32.mrb[0].mxu0
  %399 = vmatprep.mubr.bf16.mxu0 0
  %400 = vmatmul.mubr.bf16.gmra.mrb[0].mxu0 %v246
  %v401 = vpop.f32.mrb[0].mxu0
  %v402 = vadd.f32 0.0, %v401
  %v403 = vpop.f32.mrb[0].mxu0
  %v404 = vpop.f32.mrb[0].mxu0
  %v405 = vadd.f32 0.0, %v404
  %v406 = vpop.f32.mrb[0].mxu0
  %407 = vmatprep.mubr.bf16.mxu0 0
  %408 = vmatmul.mubr.bf16.gmra.mrb[0].mxu0 %v249
  %v409 = vpop.f32.mrb[0].mxu0
  %v410 = vadd.f32 0.0, %v409
  %v411 = vpop.f32.mrb[0].mxu0
  %v412 = vpop.f32.mrb[0].mxu0
  %v413 = vadd.f32 0.0, %v412
  %v414 = vpop.f32.mrb[0].mxu0
  %415 = vmatprep.mubr.bf16.mxu0 0
  %416 = vmatmul.mubr.bf16.gmra.mrb[0].mxu0 %v252
  %v417 = vpop.f32.mrb[0].mxu0
  %v418 = vadd.f32 0.0, %v417
  %v419 = vpop.f32.mrb[0].mxu0
  %v420 = vpop.f32.mrb[0].mxu0
  %v421 = vadd.f32 0.0, %v420
  %v422 = vpop.f32.mrb[0].mxu0
  %423 = vmatprep.mubr.bf16.mxu0 0
  %424 = vmatmul.mubr.bf16.gmra.mrb[0].mxu0 %v255
  %v425 = vpop.f32.mrb[0].mxu0
  %v426 = vadd.f32 0.0, %v425
  %v427 = vpop.f32.mrb[0].mxu0
  %v428 = vpop.f32.mrb[0].mxu0
  %v429 = vadd.f32 0.0, %v428
  %v430 = vpop.f32.mrb[0].mxu0
  %431 = vmatprep.mubr.bf16.mxu0 0
  %432 = vmatmul.mubr.bf16.gmra.mrb[0].mxu0 %v258
  %v433 = vpop.f32.mrb[0].mxu0
  %v434 = vadd.f32 0.0, %v433
  %v435 = vpop.f32.mrb[0].mxu0
  %v436 = vpop.f32.mrb[0].mxu0
  %v437 = vadd.f32 0.0, %v436
  %v438 = vpop.f32.mrb[0].mxu0
  %439 = vmatprep.mubr.bf16.mxu0 0
  %440 = vmatmul.mubr.bf16.gmra.mrb[0].mxu0 %v261
  %v441 = vpop.f32.mrb[0].mxu0
  %v442 = vadd.f32 0.0, %v441
  %v443 = vpop.f32.mrb[0].mxu0
  %v444 = vpop.f32.mrb[0].mxu0
  %v445 = vadd.f32 0.0, %v444
  %v446 = vpop.f32.mrb[0].mxu0
  %447 = vmatprep.mubr.bf16.mxu0 0
  %448 = vmatmul.mubr.bf16.gmra.mrb[0].mxu0 %v264
  %v449 = vpop.f32.mrb[0].mxu0
  %v450 = vadd.f32 0.0, %v449
  %v451 = vpop.f32.mrb[0].mxu0
  %v452 = vpop.f32.mrb[0].mxu0
  %v453 = vadd.f32 0.0, %v452
  %v454 = vpop.f32.mrb[0].mxu0
  %455 = vmatprep.mubr.bf16.mxu0 0
  %456 = vmatmul.mubr.bf16.gmra.mrb[0].mxu0 %v267
  %v457 = vpop.f32.mrb[0].mxu0
  %v458 = vadd.f32 0.0, %v457
  %v459 = vpop.f32.mrb[0].mxu0
  %v460 = vpop.f32.mrb[0].mxu0
  %v461 = vadd.f32 0.0, %v460
  %v462 = vpop.f32.mrb[0].mxu0
  %463 = vmatprep.mubr.bf16.mxu0 0
  %464 = vmatmul.mubr.bf16.gmra.mrb[0].mxu0 %v270
  %v465 = vpop.f32.mrb[0].mxu0
  %v466 = vadd.f32 0.0, %v465
  %v467 = vpop.f32.mrb[0].mxu0
  %v468 = vpop.f32.mrb[0].mxu0
  %v469 = vadd.f32 0.0, %v468
  %v470 = vpop.f32.mrb[0].mxu0
  %471 = vmatprep.mubr.bf16.mxu0 0
  %472 = vmatmul.mubr.bf16.gmra.mrb[0].mxu0 %v273
  %v473 = vpop.f32.mrb[0].mxu0
  %v474 = vadd.f32 0.0, %v473
  %v475 = vpop.f32.mrb[0].mxu0
  %v476 = vpop.f32.mrb[0].mxu0
  %v477 = vadd.f32 0.0, %v476
  %v478 = vpop.f32.mrb[0].mxu0
  %479 = vmatprep.mubr.bf16.mxu0 0
  %480 = vmatmul.mubr.bf16.gmra.mrb[0].mxu0 %v276
  %v481 = vpop.f32.mrb[0].mxu0
  %v482 = vadd.f32 0.0, %v481
  %v483 = vpop.f32.mrb[0].mxu0
  %v484 = vpop.f32.mrb[0].mxu0
  %v485 = vadd.f32 0.0, %v484
  %v486 = vpop.f32.mrb[0].mxu0
  %487 = vmatprep.mubr.bf16.mxu0 0
  %488 = vmatmul.mubr.bf16.gmra.mrb[0].mxu0 %v279
  %v489 = vpop.f32.mrb[0].mxu0
  %v490 = vadd.f32 0.0, %v489
  %v491 = vpop.f32.mrb[0].mxu0
  %v492 = vpop.f32.mrb[0].mxu0
  %v493 = vadd.f32 0.0, %v492
  %v494 = vpop.f32.mrb[0].mxu0
  %495 = vmatprep.mubr.bf16.mxu0 0
  %496 = vmatmul.mubr.bf16.gmra.mrb[0].mxu0 %v282
  %v497 = vpop.f32.mrb[0].mxu0
  %v498 = vadd.f32 0.0, %v497
  %v499 = vpop.f32.mrb[0].mxu0
  %v500 = vpop.f32.mrb[0].mxu0
  %v501 = vadd.f32 0.0, %v500
  %v502 = vpop.f32.mrb[0].mxu0
  %503 = vmatprep.mubr.bf16.mxu0 0
  %504 = vmatmul.mubr.bf16.gmra.mrb[0].mxu0 %v285
  %v505 = vpop.f32.mrb[0].mxu0
  %v506 = vadd.f32 0.0, %v505
  %v507 = vpop.f32.mrb[0].mxu0
  %v508 = vpop.f32.mrb[0].mxu0
  %v509 = vadd.f32 0.0, %v508
  %v510 = vpop.f32.mrb[0].mxu0
  %511 = vdwg.mxu0
  %vm560 = vcmask 1046528
  %v561 = vrot.slane %v322, 1
  %v562 = vrot.slane %v325, 1
  %v563 = vsel %vm560, %v561, %v562
  %v564 = vrot.slane %v330, 1
  %v565 = vsel %vm560, %v562, %v564
  %v566 = vrot.slane %v333, 1
  %v567 = vsel %vm560, %v564, %v566
  %v568 = vrot.slane %v338, 1
  %v569 = vsel %vm560, %v566, %v568
  %v570 = vrot.slane %v341, 1
  %v571 = vsel %vm560, %v568, %v570
  %v572 = vrot.slane %v346, 1
  %v573 = vsel %vm560, %v570, %v572
  %v574 = vrot.slane %v349, 1
  %v575 = vsel %vm560, %v572, %v574
  %v576 = vrot.slane %v354, 1
  %v577 = vsel %vm560, %v574, %v576
  %v578 = vrot.slane %v357, 1
  %v579 = vsel %vm560, %v576, %v578
  %v580 = vrot.slane %v362, 1
  %v581 = vsel %vm560, %v578, %v580
  %v582 = vrot.slane %v365, 1
  %v583 = vsel %vm560, %v580, %v582
  %v584 = vrot.slane %v370, 1
  %v585 = vsel %vm560, %v582, %v584
  %v586 = vrot.slane %v373, 1
  %v587 = vsel %vm560, %v584, %v586
  %v588 = vrot.slane %v378, 1
  %v589 = vsel %vm560, %v586, %v588
  %v590 = vrot.slane %v381, 1
  %v591 = vsel %vm560, %v588, %v590
  %v592 = vrot.slane %v386, 1
  %v593 = vsel %vm560, %v590, %v592
  %v594 = vrot.slane %v389, 1
  %v595 = vsel %vm560, %v592, %v594
  %v596 = vrot.slane %v394, 1
  %v597 = vsel %vm560, %v594, %v596
  %v598 = vrot.slane %v397, 1
  %v599 = vsel %vm560, %v596, %v598
  %v600 = vrot.slane %v402, 1
  %v601 = vsel %vm560, %v598, %v600
  %v602 = vrot.slane %v405, 1
  %v603 = vsel %vm560, %v600, %v602
  %v604 = vrot.slane %v410, 1
  %v605 = vsel %vm560, %v602, %v604
  %v606 = vrot.slane %v413, 1
  %v607 = vsel %vm560, %v604, %v606
  %v608 = vrot.slane %v418, 1
  %v609 = vsel %vm560, %v606, %v608
  %v610 = vrot.slane %v421, 1
  %v611 = vsel %vm560, %v608, %v610
  %v612 = vrot.slane %v426, 1
  %v613 = vsel %vm560, %v610, %v612
  %v614 = vrot.slane %v429, 1
  %v615 = vsel %vm560, %v612, %v614
  %v616 = vrot.slane %v434, 1
  %v617 = vsel %vm560, %v614, %v616
  %v618 = vrot.slane %v437, 1
  %v619 = vsel %vm560, %v616, %v618
  %v620 = vrot.slane %v442, 1
  %v621 = vsel %vm560, %v618, %v620
  %v622 = vrot.slane %v445, 1
  %v623 = vsel %vm560, %v620, %v622
  %v624 = vrot.slane %v450, 1
  %v625 = vsel %vm560, %v622, %v624
  %v626 = vrot.slane %v453, 1
  %v627 = vsel %vm560, %v624, %v626
  %v628 = vrot.slane %v458, 1
  %v629 = vsel %vm560, %v626, %v628
  %v630 = vrot.slane %v461, 1
  %v631 = vsel %vm560, %v628, %v630
  %v632 = vrot.slane %v466, 1
  %v633 = vsel %vm560, %v630, %v632
  %v634 = vrot.slane %v469, 1
  %v635 = vsel %vm560, %v632, %v634
  %v636 = vrot.slane %v474, 1
  %v637 = vsel %vm560, %v634, %v636
  %v638 = vrot.slane %v477, 1
  %v639 = vsel %vm560, %v636, %v638
  %v640 = vrot.slane %v482, 1
  %v641 = vsel %vm560, %v638, %v640
  %v642 = vrot.slane %v485, 1
  %v643 = vsel %vm560, %v640, %v642
  %v644 = vrot.slane %v490, 1
  %v645 = vsel %vm560, %v642, %v644
  %v646 = vrot.slane %v493, 1
  %v647 = vsel %vm560, %v644, %v646
  %v648 = vrot.slane %v498, 1
  %v649 = vsel %vm560, %v646, %v648
  %v650 = vrot.slane %v501, 1
  %v651 = vsel %vm560, %v648, %v650
  %v652 = vrot.slane %v506, 1
  %v653 = vsel %vm560, %v650, %v652
  %v654 = vrot.slane %v509, 1
  %v655 = vsel %vm560, %v652, %v654
  %v705 = vsel %vm560, %v654, %v561
  %v712 = vunpack.c.l.b16 %v63
  %v713 = vunpack.c.l.b16 %v64
  %v714 = vunpack.c.l.b16 %v65
  %v715 = vunpack.c.l.b16 %v66
  %v716 = vunpack.c.l.b16 %v67
  %v717 = vunpack.c.l.b16 %v68
  %v718 = vpack.c.b16 %v713, %v712
  %v719 = vpack.c.b16 %v715, %v714
  %v720 = vpack.c.b16 %v717, %v716
  %724 = vmatprep.subr.bf16.mxu0 0
  %725 = vmatpush1.bf16.msra.mxu0 %v718
  %726 = vmatprep.subr.bf16.mxu0 0
  %727 = vmatpush1.bf16.msra.mxu0 %v719
  %728 = vmatprep.subr.bf16.mxu0 0
  %729 = vmatpush1.bf16.msra.mxu0 %v720
  %730 = vmatprep.subr.bf16.mxu0 0
  %731 = vmatpush1.bf16.msra.mxu0 0
  %732 = vmatprep.subr.bf16.mxu0 0
  %733 = vmatpush1.bf16.msra.mxu0 0
  %734 = vmatprep.subr.bf16.mxu0 0
  %735 = vmatpush1.bf16.msra.mxu0 0
  %736 = vmatprep.subr.bf16.mxu0 0
  %737 = vmatpush1.bf16.msra.mxu0 0
  %738 = vmatprep.subr.bf16.mxu0 0
  %739 = vmatpush1.bf16.msra.mxu0 0
  %740 = vmatprep.subr.bf16.mxu0 0
  %741 = vmatpush1.bf16.msra.mxu0 0
  %742 = vmatprep.subr.bf16.mxu0 0
  %743 = vmatpush1.bf16.msra.mxu0 0
  %744 = vmatprep.subr.bf16.mxu0 0
  %745 = vmatpush1.bf16.msra.mxu0 0
  %746 = vmatprep.subr.bf16.mxu0 0
  %747 = vmatpush1.bf16.msra.mxu0 0
  %748 = vmatprep.subr.bf16.mxu0 0
  %749 = vmatpush1.bf16.msra.mxu0 0
  %750 = vmatprep.subr.bf16.mxu0 0
  %751 = vmatpush1.bf16.msra.mxu0 0
  %752 = vmatprep.subr.bf16.mxu0 0
  %753 = vmatpush1.bf16.msra.mxu0 0
  %754 = vmatprep.subr.bf16.mxu0 0
  %755 = vmatpush1.bf16.msra.mxu0 0
  %756 = vmatprep.mubr.bf16.mxu0 0
  %757 = vmatmul.mubr.bf16.gmra.mrb[0].mxu0 %v216
  %v758 = vpop.f32.mrb[0].mxu0
  %v759 = vadd.f32 %v563, %v758
  %v760 = vpop.f32.mrb[0].mxu0
  %v761 = vpop.f32.mrb[0].mxu0
  %v762 = vadd.f32 %v565, %v761
  %v763 = vpop.f32.mrb[0].mxu0
  %764 = vmatprep.mubr.bf16.mxu0 0
  %765 = vmatmul.mubr.bf16.gmra.mrb[0].mxu0 %v219
  %v766 = vpop.f32.mrb[0].mxu0
  %v767 = vadd.f32 %v567, %v766
  %v768 = vpop.f32.mrb[0].mxu0
  %v769 = vpop.f32.mrb[0].mxu0
  %v770 = vadd.f32 %v569, %v769
  %v771 = vpop.f32.mrb[0].mxu0
  %772 = vmatprep.mubr.bf16.mxu0 0
  %773 = vmatmul.mubr.bf16.gmra.mrb[0].mxu0 %v222
  %v774 = vpop.f32.mrb[0].mxu0
  %v775 = vadd.f32 %v571, %v774
  %v776 = vpop.f32.mrb[0].mxu0
  %v777 = vpop.f32.mrb[0].mxu0
  %v778 = vadd.f32 %v573, %v777
  %v779 = vpop.f32.mrb[0].mxu0
  %780 = vmatprep.mubr.bf16.mxu0 0
  %781 = vmatmul.mubr.bf16.gmra.mrb[0].mxu0 %v225
  %v782 = vpop.f32.mrb[0].mxu0
  %v783 = vadd.f32 %v575, %v782
  %v784 = vpop.f32.mrb[0].mxu0
  %v785 = vpop.f32.mrb[0].mxu0
  %v786 = vadd.f32 %v577, %v785
  %v787 = vpop.f32.mrb[0].mxu0
  %788 = vmatprep.mubr.bf16.mxu0 0
  %789 = vmatmul.mubr.bf16.gmra.mrb[0].mxu0 %v228
  %v790 = vpop.f32.mrb[0].mxu0
  %v791 = vadd.f32 %v579, %v790
  %v792 = vpop.f32.mrb[0].mxu0
  %v793 = vpop.f32.mrb[0].mxu0
  %v794 = vadd.f32 %v581, %v793
  %v795 = vpop.f32.mrb[0].mxu0
  %796 = vmatprep.mubr.bf16.mxu0 0
  %797 = vmatmul.mubr.bf16.gmra.mrb[0].mxu0 %v231
  %v798 = vpop.f32.mrb[0].mxu0
  %v799 = vadd.f32 %v583, %v798
  %v800 = vpop.f32.mrb[0].mxu0
  %v801 = vpop.f32.mrb[0].mxu0
  %v802 = vadd.f32 %v585, %v801
  %v803 = vpop.f32.mrb[0].mxu0
  %804 = vmatprep.mubr.bf16.mxu0 0
  %805 = vmatmul.mubr.bf16.gmra.mrb[0].mxu0 %v234
  %v806 = vpop.f32.mrb[0].mxu0
  %v807 = vadd.f32 %v587, %v806
  %v808 = vpop.f32.mrb[0].mxu0
  %v809 = vpop.f32.mrb[0].mxu0
  %v810 = vadd.f32 %v589, %v809
  %v811 = vpop.f32.mrb[0].mxu0
  %812 = vmatprep.mubr.bf16.mxu0 0
  %813 = vmatmul.mubr.bf16.gmra.mrb[0].mxu0 %v237
  %v814 = vpop.f32.mrb[0].mxu0
  %v815 = vadd.f32 %v591, %v814
  %v816 = vpop.f32.mrb[0].mxu0
  %v817 = vpop.f32.mrb[0].mxu0
  %v818 = vadd.f32 %v593, %v817
  %v819 = vpop.f32.mrb[0].mxu0
  %820 = vmatprep.mubr.bf16.mxu0 0
  %821 = vmatmul.mubr.bf16.gmra.mrb[0].mxu0 %v240
  %v822 = vpop.f32.mrb[0].mxu0
  %v823 = vadd.f32 %v595, %v822
  %v824 = vpop.f32.mrb[0].mxu0
  %v825 = vpop.f32.mrb[0].mxu0
  %v826 = vadd.f32 %v597, %v825
  %v827 = vpop.f32.mrb[0].mxu0
  %828 = vmatprep.mubr.bf16.mxu0 0
  %829 = vmatmul.mubr.bf16.gmra.mrb[0].mxu0 %v243
  %v830 = vpop.f32.mrb[0].mxu0
  %v831 = vadd.f32 %v599, %v830
  %v832 = vpop.f32.mrb[0].mxu0
  %v833 = vpop.f32.mrb[0].mxu0
  %v834 = vadd.f32 %v601, %v833
  %v835 = vpop.f32.mrb[0].mxu0
  %836 = vmatprep.mubr.bf16.mxu0 0
  %837 = vmatmul.mubr.bf16.gmra.mrb[0].mxu0 %v246
  %v838 = vpop.f32.mrb[0].mxu0
  %v839 = vadd.f32 %v603, %v838
  %v840 = vpop.f32.mrb[0].mxu0
  %v841 = vpop.f32.mrb[0].mxu0
  %v842 = vadd.f32 %v605, %v841
  %v843 = vpop.f32.mrb[0].mxu0
  %844 = vmatprep.mubr.bf16.mxu0 0
  %845 = vmatmul.mubr.bf16.gmra.mrb[0].mxu0 %v249
  %v846 = vpop.f32.mrb[0].mxu0
  %v847 = vadd.f32 %v607, %v846
  %v848 = vpop.f32.mrb[0].mxu0
  %v849 = vpop.f32.mrb[0].mxu0
  %v850 = vadd.f32 %v609, %v849
  %v851 = vpop.f32.mrb[0].mxu0
  %852 = vmatprep.mubr.bf16.mxu0 0
  %853 = vmatmul.mubr.bf16.gmra.mrb[0].mxu0 %v252
  %v854 = vpop.f32.mrb[0].mxu0
  %v855 = vadd.f32 %v611, %v854
  %v856 = vpop.f32.mrb[0].mxu0
  %v857 = vpop.f32.mrb[0].mxu0
  %v858 = vadd.f32 %v613, %v857
  %v859 = vpop.f32.mrb[0].mxu0
  %860 = vmatprep.mubr.bf16.mxu0 0
  %861 = vmatmul.mubr.bf16.gmra.mrb[0].mxu0 %v255
  %v862 = vpop.f32.mrb[0].mxu0
  %v863 = vadd.f32 %v615, %v862
  %v864 = vpop.f32.mrb[0].mxu0
  %v865 = vpop.f32.mrb[0].mxu0
  %v866 = vadd.f32 %v617, %v865
  %v867 = vpop.f32.mrb[0].mxu0
  %868 = vmatprep.mubr.bf16.mxu0 0
  %869 = vmatmul.mubr.bf16.gmra.mrb[0].mxu0 %v258
  %v870 = vpop.f32.mrb[0].mxu0
  %v871 = vadd.f32 %v619, %v870
  %v872 = vpop.f32.mrb[0].mxu0
  %v873 = vpop.f32.mrb[0].mxu0
  %v874 = vadd.f32 %v621, %v873
  %v875 = vpop.f32.mrb[0].mxu0
  %876 = vmatprep.mubr.bf16.mxu0 0
  %877 = vmatmul.mubr.bf16.gmra.mrb[0].mxu0 %v261
  %v878 = vpop.f32.mrb[0].mxu0
  %v879 = vadd.f32 %v623, %v878
  %v880 = vpop.f32.mrb[0].mxu0
  %v881 = vpop.f32.mrb[0].mxu0
  %v882 = vadd.f32 %v625, %v881
  %v883 = vpop.f32.mrb[0].mxu0
  %884 = vmatprep.mubr.bf16.mxu0 0
  %885 = vmatmul.mubr.bf16.gmra.mrb[0].mxu0 %v264
  %v886 = vpop.f32.mrb[0].mxu0
  %v887 = vadd.f32 %v627, %v886
  %v888 = vpop.f32.mrb[0].mxu0
  %v889 = vpop.f32.mrb[0].mxu0
  %v890 = vadd.f32 %v629, %v889
  %v891 = vpop.f32.mrb[0].mxu0
  %892 = vmatprep.mubr.bf16.mxu0 0
  %893 = vmatmul.mubr.bf16.gmra.mrb[0].mxu0 %v267
  %v894 = vpop.f32.mrb[0].mxu0
  %v895 = vadd.f32 %v631, %v894
  %v896 = vpop.f32.mrb[0].mxu0
  %v897 = vpop.f32.mrb[0].mxu0
  %v898 = vadd.f32 %v633, %v897
  %v899 = vpop.f32.mrb[0].mxu0
  %900 = vmatprep.mubr.bf16.mxu0 0
  %901 = vmatmul.mubr.bf16.gmra.mrb[0].mxu0 %v270
  %v902 = vpop.f32.mrb[0].mxu0
  %v903 = vadd.f32 %v635, %v902
  %v904 = vpop.f32.mrb[0].mxu0
  %v905 = vpop.f32.mrb[0].mxu0
  %v906 = vadd.f32 %v637, %v905
  %v907 = vpop.f32.mrb[0].mxu0
  %908 = vmatprep.mubr.bf16.mxu0 0
  %909 = vmatmul.mubr.bf16.gmra.mrb[0].mxu0 %v273
  %v910 = vpop.f32.mrb[0].mxu0
  %v911 = vadd.f32 %v639, %v910
  %v912 = vpop.f32.mrb[0].mxu0
  %v913 = vpop.f32.mrb[0].mxu0
  %v914 = vadd.f32 %v641, %v913
  %v915 = vpop.f32.mrb[0].mxu0
  %916 = vmatprep.mubr.bf16.mxu0 0
  %917 = vmatmul.mubr.bf16.gmra.mrb[0].mxu0 %v276
  %v918 = vpop.f32.mrb[0].mxu0
  %v919 = vadd.f32 %v643, %v918
  %v920 = vpop.f32.mrb[0].mxu0
  %v921 = vpop.f32.mrb[0].mxu0
  %v922 = vadd.f32 %v645, %v921
  %v923 = vpop.f32.mrb[0].mxu0
  %924 = vmatprep.mubr.bf16.mxu0 0
  %925 = vmatmul.mubr.bf16.gmra.mrb[0].mxu0 %v279
  %v926 = vpop.f32.mrb[0].mxu0
  %v927 = vadd.f32 %v647, %v926
  %v928 = vpop.f32.mrb[0].mxu0
  %v929 = vpop.f32.mrb[0].mxu0
  %v930 = vadd.f32 %v649, %v929
  %v931 = vpop.f32.mrb[0].mxu0
  %932 = vmatprep.mubr.bf16.mxu0 0
  %933 = vmatmul.mubr.bf16.gmra.mrb[0].mxu0 %v282
  %v934 = vpop.f32.mrb[0].mxu0
  %v935 = vadd.f32 %v651, %v934
  %v936 = vpop.f32.mrb[0].mxu0
  %v937 = vpop.f32.mrb[0].mxu0
  %v938 = vadd.f32 %v653, %v937
  %v939 = vpop.f32.mrb[0].mxu0
  %940 = vmatprep.mubr.bf16.mxu0 0
  %941 = vmatmul.mubr.bf16.gmra.mrb[0].mxu0 %v285
  %v942 = vpop.f32.mrb[0].mxu0
  %v943 = vadd.f32 %v655, %v942
  %v944 = vpop.f32.mrb[0].mxu0
  %v945 = vpop.f32.mrb[0].mxu0
  %v946 = vadd.f32 %v705, %v945
  %v947 = vpop.f32.mrb[0].mxu0
  %948 = vdwg.mxu0
  %s949 = scalar_lea.vmem %s1, 48
  %v950 = vld [vmem:[%s949] sm:$0xf]
  %v951 = vld [vmem:[%s949 + $0x4] sm:$0xf]
  %v952 = vld [vmem:[%s949 + $0x8] sm:$0xf]
  %v953 = vld [vmem:[%s949 + $0xc] sm:$0xf]
  %v954 = vld [vmem:[%s949 + $0x10] sm:$0xf]
  %v955 = vld [vmem:[%s949 + $0x14] sm:$0xf]
  %v962 = vunpack.c.l.b16 %v950
  %v963 = vunpack.c.l.b16 %v951
  %v964 = vunpack.c.l.b16 %v952
  %v965 = vunpack.c.l.b16 %v953
  %v966 = vunpack.c.l.b16 %v954
  %v967 = vunpack.c.l.b16 %v955
  %v968 = vpack.c.b16 %v963, %v962
  %v969 = vpack.c.b16 %v965, %v964
  %v970 = vpack.c.b16 %v967, %v966
  %974 = vmatprep.subr.bf16.mxu0 0
  %975 = vmatpush1.bf16.msra.mxu0 %v968
  %976 = vmatprep.subr.bf16.mxu0 0
  %977 = vmatpush1.bf16.msra.mxu0 %v969
  %978 = vmatprep.subr.bf16.mxu0 0
  %979 = vmatpush1.bf16.msra.mxu0 %v970
  %980 = vmatprep.subr.bf16.mxu0 0
  %981 = vmatpush1.bf16.msra.mxu0 0
  %982 = vmatprep.subr.bf16.mxu0 0
  %983 = vmatpush1.bf16.msra.mxu0 0
  %984 = vmatprep.subr.bf16.mxu0 0
  %985 = vmatpush1.bf16.msra.mxu0 0
  %986 = vmatprep.subr.bf16.mxu0 0
  %987 = vmatpush1.bf16.msra.mxu0 0
  %988 = vmatprep.subr.bf16.mxu0 0
  %989 = vmatpush1.bf16.msra.mxu0 0
  %990 = vmatprep.subr.bf16.mxu0 0
  %991 = vmatpush1.bf16.msra.mxu0 0
  %992 = vmatprep.subr.bf16.mxu0 0
  %993 = vmatpush1.bf16.msra.mxu0 0
  %994 = vmatprep.subr.bf16.mxu0 0
  %995 = vmatpush1.bf16.msra.mxu0 0
  %996 = vmatprep.subr.bf16.mxu0 0
  %997 = vmatpush1.bf16.msra.mxu0 0
  %998 = vmatprep.subr.bf16.mxu0 0
  %999 = vmatpush1.bf16.msra.mxu0 0
  %1000 = vmatprep.subr.bf16.mxu0 0
  %1001 = vmatpush1.bf16.msra.mxu0 0
  %1002 = vmatprep.subr.bf16.mxu0 0
  %1003 = vmatpush1.bf16.msra.mxu0 0
  %1004 = vmatprep.subr.bf16.mxu0 0
  %1005 = vmatpush1.bf16.msra.mxu0 0
  %1006 = vmatprep.mubr.bf16.mxu0 0
  %1007 = vmatmul.mubr.bf16.gmra.mrb[0].mxu0 %v216
  %v1008 = vpop.f32.mrb[0].mxu0
  %v1009 = vadd.f32 0.0, %v1008
  %v1010 = vpop.f32.mrb[0].mxu0
  %v1011 = vpop.f32.mrb[0].mxu0
  %v1012 = vadd.f32 0.0, %v1011
  %v1013 = vpop.f32.mrb[0].mxu0
  %1014 = vmatprep.mubr.bf16.mxu0 0
  %1015 = vmatmul.mubr.bf16.gmra.mrb[0].mxu0 %v219
  %v1016 = vpop.f32.mrb[0].mxu0
  %v1017 = vadd.f32 0.0, %v1016
  %v1018 = vpop.f32.mrb[0].mxu0
  %v1019 = vpop.f32.mrb[0].mxu0
  %v1020 = vadd.f32 0.0, %v1019
  %v1021 = vpop.f32.mrb[0].mxu0
  %1022 = vmatprep.mubr.bf16.mxu0 0
  %1023 = vmatmul.mubr.bf16.gmra.mrb[0].mxu0 %v222
  %v1024 = vpop.f32.mrb[0].mxu0
  %v1025 = vadd.f32 0.0, %v1024
  %v1026 = vpop.f32.mrb[0].mxu0
  %v1027 = vpop.f32.mrb[0].mxu0
  %v1028 = vadd.f32 0.0, %v1027
  %v1029 = vpop.f32.mrb[0].mxu0
  %1030 = vmatprep.mubr.bf16.mxu0 0
  %1031 = vmatmul.mubr.bf16.gmra.mrb[0].mxu0 %v225
  %v1032 = vpop.f32.mrb[0].mxu0
  %v1033 = vadd.f32 0.0, %v1032
  %v1034 = vpop.f32.mrb[0].mxu0
  %v1035 = vpop.f32.mrb[0].mxu0
  %v1036 = vadd.f32 0.0, %v1035
  %v1037 = vpop.f32.mrb[0].mxu0
  %1038 = vmatprep.mubr.bf16.mxu0 0
  %1039 = vmatmul.mubr.bf16.gmra.mrb[0].mxu0 %v228
  %v1040 = vpop.f32.mrb[0].mxu0
  %v1041 = vadd.f32 0.0, %v1040
  %v1042 = vpop.f32.mrb[0].mxu0
  %v1043 = vpop.f32.mrb[0].mxu0
  %v1044 = vadd.f32 0.0, %v1043
  %v1045 = vpop.f32.mrb[0].mxu0
  %1046 = vmatprep.mubr.bf16.mxu0 0
  %1047 = vmatmul.mubr.bf16.gmra.mrb[0].mxu0 %v231
  %v1048 = vpop.f32.mrb[0].mxu0
  %v1049 = vadd.f32 0.0, %v1048
  %v1050 = vpop.f32.mrb[0].mxu0
  %v1051 = vpop.f32.mrb[0].mxu0
  %v1052 = vadd.f32 0.0, %v1051
  %v1053 = vpop.f32.mrb[0].mxu0
  %1054 = vmatprep.mubr.bf16.mxu0 0
  %1055 = vmatmul.mubr.bf16.gmra.mrb[0].mxu0 %v234
  %v1056 = vpop.f32.mrb[0].mxu0
  %v1057 = vadd.f32 0.0, %v1056
  %v1058 = vpop.f32.mrb[0].mxu0
  %v1059 = vpop.f32.mrb[0].mxu0
  %v1060 = vadd.f32 0.0, %v1059
  %v1061 = vpop.f32.mrb[0].mxu0
  %1062 = vmatprep.mubr.bf16.mxu0 0
  %1063 = vmatmul.mubr.bf16.gmra.mrb[0].mxu0 %v237
  %v1064 = vpop.f32.mrb[0].mxu0
  %v1065 = vadd.f32 0.0, %v1064
  %v1066 = vpop.f32.mrb[0].mxu0
  %v1067 = vpop.f32.mrb[0].mxu0
  %v1068 = vadd.f32 0.0, %v1067
  %v1069 = vpop.f32.mrb[0].mxu0
  %1070 = vmatprep.mubr.bf16.mxu0 0
  %1071 = vmatmul.mubr.bf16.gmra.mrb[0].mxu0 %v240
  %v1072 = vpop.f32.mrb[0].mxu0
  %v1073 = vadd.f32 0.0, %v1072
  %v1074 = vpop.f32.mrb[0].mxu0
  %v1075 = vpop.f32.mrb[0].mxu0
  %v1076 = vadd.f32 0.0, %v1075
  %v1077 = vpop.f32.mrb[0].mxu0
  %1078 = vmatprep.mubr.bf16.mxu0 0
  %1079 = vmatmul.mubr.bf16.gmra.mrb[0].mxu0 %v243
  %v1080 = vpop.f32.mrb[0].mxu0
  %v1081 = vadd.f32 0.0, %v1080
  %v1082 = vpop.f32.mrb[0].mxu0
  %v1083 = vpop.f32.mrb[0].mxu0
  %v1084 = vadd.f32 0.0, %v1083
  %v1085 = vpop.f32.mrb[0].mxu0
  %1086 = vmatprep.mubr.bf16.mxu0 0
  %1087 = vmatmul.mubr.bf16.gmra.mrb[0].mxu0 %v246
  %v1088 = vpop.f32.mrb[0].mxu0
  %v1089 = vadd.f32 0.0, %v1088
  %v1090 = vpop.f32.mrb[0].mxu0
  %v1091 = vpop.f32.mrb[0].mxu0
  %v1092 = vadd.f32 0.0, %v1091
  %v1093 = vpop.f32.mrb[0].mxu0
  %1094 = vmatprep.mubr.bf16.mxu0 0
  %1095 = vmatmul.mubr.bf16.gmra.mrb[0].mxu0 %v249
  %v1096 = vpop.f32.mrb[0].mxu0
  %v1097 = vadd.f32 0.0, %v1096
  %v1098 = vpop.f32.mrb[0].mxu0
  %v1099 = vpop.f32.mrb[0].mxu0
  %v1100 = vadd.f32 0.0, %v1099
  %v1101 = vpop.f32.mrb[0].mxu0
  %1102 = vmatprep.mubr.bf16.mxu0 0
  %1103 = vmatmul.mubr.bf16.gmra.mrb[0].mxu0 %v252
  %v1104 = vpop.f32.mrb[0].mxu0
  %v1105 = vadd.f32 0.0, %v1104
  %v1106 = vpop.f32.mrb[0].mxu0
  %v1107 = vpop.f32.mrb[0].mxu0
  %v1108 = vadd.f32 0.0, %v1107
  %v1109 = vpop.f32.mrb[0].mxu0
  %1110 = vmatprep.mubr.bf16.mxu0 0
  %1111 = vmatmul.mubr.bf16.gmra.mrb[0].mxu0 %v255
  %v1112 = vpop.f32.mrb[0].mxu0
  %v1113 = vadd.f32 0.0, %v1112
  %v1114 = vpop.f32.mrb[0].mxu0
  %v1115 = vpop.f32.mrb[0].mxu0
  %v1116 = vadd.f32 0.0, %v1115
  %v1117 = vpop.f32.mrb[0].mxu0
  %1118 = vmatprep.mubr.bf16.mxu0 0
  %1119 = vmatmul.mubr.bf16.gmra.mrb[0].mxu0 %v258
  %v1120 = vpop.f32.mrb[0].mxu0
  %v1121 = vadd.f32 0.0, %v1120
  %v1122 = vpop.f32.mrb[0].mxu0
  %v1123 = vpop.f32.mrb[0].mxu0
  %v1124 = vadd.f32 0.0, %v1123
  %v1125 = vpop.f32.mrb[0].mxu0
  %1126 = vmatprep.mubr.bf16.mxu0 0
  %1127 = vmatmul.mubr.bf16.gmra.mrb[0].mxu0 %v261
  %v1128 = vpop.f32.mrb[0].mxu0
  %v1129 = vadd.f32 0.0, %v1128
  %v1130 = vpop.f32.mrb[0].mxu0
  %v1131 = vpop.f32.mrb[0].mxu0
  %v1132 = vadd.f32 0.0, %v1131
  %v1133 = vpop.f32.mrb[0].mxu0
  %1134 = vmatprep.mubr.bf16.mxu0 0
  %1135 = vmatmul.mubr.bf16.gmra.mrb[0].mxu0 %v264
  %v1136 = vpop.f32.mrb[0].mxu0
  %v1137 = vadd.f32 0.0, %v1136
  %v1138 = vpop.f32.mrb[0].mxu0
  %v1139 = vpop.f32.mrb[0].mxu0
  %v1140 = vadd.f32 0.0, %v1139
  %v1141 = vpop.f32.mrb[0].mxu0
  %1142 = vmatprep.mubr.bf16.mxu0 0
  %1143 = vmatmul.mubr.bf16.gmra.mrb[0].mxu0 %v267
  %v1144 = vpop.f32.mrb[0].mxu0
  %v1145 = vadd.f32 0.0, %v1144
  %v1146 = vpop.f32.mrb[0].mxu0
  %v1147 = vpop.f32.mrb[0].mxu0
  %v1148 = vadd.f32 0.0, %v1147
  %v1149 = vpop.f32.mrb[0].mxu0
  %1150 = vmatprep.mubr.bf16.mxu0 0
  %1151 = vmatmul.mubr.bf16.gmra.mrb[0].mxu0 %v270
  %v1152 = vpop.f32.mrb[0].mxu0
  %v1153 = vadd.f32 0.0, %v1152
  %v1154 = vpop.f32.mrb[0].mxu0
  %v1155 = vpop.f32.mrb[0].mxu0
  %v1156 = vadd.f32 0.0, %v1155
  %v1157 = vpop.f32.mrb[0].mxu0
  %1158 = vmatprep.mubr.bf16.mxu0 0
  %1159 = vmatmul.mubr.bf16.gmra.mrb[0].mxu0 %v273
  %v1160 = vpop.f32.mrb[0].mxu0
  %v1161 = vadd.f32 0.0, %v1160
  %v1162 = vpop.f32.mrb[0].mxu0
  %v1163 = vpop.f32.mrb[0].mxu0
  %v1164 = vadd.f32 0.0, %v1163
  %v1165 = vpop.f32.mrb[0].mxu0
  %1166 = vmatprep.mubr.bf16.mxu0 0
  %1167 = vmatmul.mubr.bf16.gmra.mrb[0].mxu0 %v276
  %v1168 = vpop.f32.mrb[0].mxu0
  %v1169 = vadd.f32 0.0, %v1168
  %v1170 = vpop.f32.mrb[0].mxu0
  %v1171 = vpop.f32.mrb[0].mxu0
  %v1172 = vadd.f32 0.0, %v1171
  %v1173 = vpop.f32.mrb[0].mxu0
  %1174 = vmatprep.mubr.bf16.mxu0 0
  %1175 = vmatmul.mubr.bf16.gmra.mrb[0].mxu0 %v279
  %v1176 = vpop.f32.mrb[0].mxu0
  %v1177 = vadd.f32 0.0, %v1176
  %v1178 = vpop.f32.mrb[0].mxu0
  %v1179 = vpop.f32.mrb[0].mxu0
  %v1180 = vadd.f32 0.0, %v1179
  %v1181 = vpop.f32.mrb[0].mxu0
  %1182 = vmatprep.mubr.bf16.mxu0 0
  %1183 = vmatmul.mubr.bf16.gmra.mrb[0].mxu0 %v282
  %v1184 = vpop.f32.mrb[0].mxu0
  %v1185 = vadd.f32 0.0, %v1184
  %v1186 = vpop.f32.mrb[0].mxu0
  %v1187 = vpop.f32.mrb[0].mxu0
  %v1188 = vadd.f32 0.0, %v1187
  %v1189 = vpop.f32.mrb[0].mxu0
  %1190 = vmatprep.mubr.bf16.mxu0 0
  %1191 = vmatmul.mubr.bf16.gmra.mrb[0].mxu0 %v285
  %v1192 = vpop.f32.mrb[0].mxu0
  %v1193 = vadd.f32 0.0, %v1192
  %v1194 = vpop.f32.mrb[0].mxu0
  %v1195 = vpop.f32.mrb[0].mxu0
  %v1196 = vadd.f32 0.0, %v1195
  %v1197 = vpop.f32.mrb[0].mxu0
  %1198 = vdwg.mxu0
  %vm1247 = vcmask 1045504
  %v1248 = vrot.slane %v1009, 2
  %v1249 = vrot.slane %v1012, 2
  %v1250 = vsel %vm1247, %v1248, %v1249
  %v1251 = vrot.slane %v1017, 2
  %v1252 = vsel %vm1247, %v1249, %v1251
  %v1253 = vrot.slane %v1020, 2
  %v1254 = vsel %vm1247, %v1251, %v1253
  %v1255 = vrot.slane %v1025, 2
  %v1256 = vsel %vm1247, %v1253, %v1255
  %v1257 = vrot.slane %v1028, 2
  %v1258 = vsel %vm1247, %v1255, %v1257
  %v1259 = vrot.slane %v1033, 2
  %v1260 = vsel %vm1247, %v1257, %v1259
  %v1261 = vrot.slane %v1036, 2
  %v1262 = vsel %vm1247, %v1259, %v1261
  %v1263 = vrot.slane %v1041, 2
  %v1264 = vsel %vm1247, %v1261, %v1263
  %v1265 = vrot.slane %v1044, 2
  %v1266 = vsel %vm1247, %v1263, %v1265
  %v1267 = vrot.slane %v1049, 2
  %v1268 = vsel %vm1247, %v1265, %v1267
  %v1269 = vrot.slane %v1052, 2
  %v1270 = vsel %vm1247, %v1267, %v1269
  %v1271 = vrot.slane %v1057, 2
  %v1272 = vsel %vm1247, %v1269, %v1271
  %v1273 = vrot.slane %v1060, 2
  %v1274 = vsel %vm1247, %v1271, %v1273
  %v1275 = vrot.slane %v1065, 2
  %v1276 = vsel %vm1247, %v1273, %v1275
  %v1277 = vrot.slane %v1068, 2
  %v1278 = vsel %vm1247, %v1275, %v1277
  %v1279 = vrot.slane %v1073, 2
  %v1280 = vsel %vm1247, %v1277, %v1279
  %v1281 = vrot.slane %v1076, 2
  %v1282 = vsel %vm1247, %v1279, %v1281
  %v1283 = vrot.slane %v1081, 2
  %v1284 = vsel %vm1247, %v1281, %v1283
  %v1285 = vrot.slane %v1084, 2
  %v1286 = vsel %vm1247, %v1283, %v1285
  %v1287 = vrot.slane %v1089, 2
  %v1288 = vsel %vm1247, %v1285, %v1287
  %v1289 = vrot.slane %v1092, 2
  %v1290 = vsel %vm1247, %v1287, %v1289
  %v1291 = vrot.slane %v1097, 2
  %v1292 = vsel %vm1247, %v1289, %v1291
  %v1293 = vrot.slane %v1100, 2
  %v1294 = vsel %vm1247, %v1291, %v1293
  %v1295 = vrot.slane %v1105, 2
  %v1296 = vsel %vm1247, %v1293, %v1295
  %v1297 = vrot.slane %v1108, 2
  %v1298 = vsel %vm1247, %v1295, %v1297
  %v1299 = vrot.slane %v1113, 2
  %v1300 = vsel %vm1247, %v1297, %v1299
  %v1301 = vrot.slane %v1116, 2
  %v1302 = vsel %vm1247, %v1299, %v1301
  %v1303 = vrot.slane %v1121, 2
  %v1304 = vsel %vm1247, %v1301, %v1303
  %v1305 = vrot.slane %v1124, 2
  %v1306 = vsel %vm1247, %v1303, %v1305
  %v1307 = vrot.slane %v1129, 2
  %v1308 = vsel %vm1247, %v1305, %v1307
  %v1309 = vrot.slane %v1132, 2
  %v1310 = vsel %vm1247, %v1307, %v1309
  %v1311 = vrot.slane %v1137, 2
  %v1312 = vsel %vm1247, %v1309, %v1311
  %v1313 = vrot.slane %v1140, 2
  %v1314 = vsel %vm1247, %v1311, %v1313
  %v1315 = vrot.slane %v1145, 2
  %v1316 = vsel %vm1247, %v1313, %v1315
  %v1317 = vrot.slane %v1148, 2
  %v1318 = vsel %vm1247, %v1315, %v1317
  %v1319 = vrot.slane %v1153, 2
  %v1320 = vsel %vm1247, %v1317, %v1319
  %v1321 = vrot.slane %v1156, 2
  %v1322 = vsel %vm1247, %v1319, %v1321
  %v1323 = vrot.slane %v1161, 2
  %v1324 = vsel %vm1247, %v1321, %v1323
  %v1325 = vrot.slane %v1164, 2
  %v1326 = vsel %vm1247, %v1323, %v1325
  %v1327 = vrot.slane %v1169, 2
  %v1328 = vsel %vm1247, %v1325, %v1327
  %v1329 = vrot.slane %v1172, 2
  %v1330 = vsel %vm1247, %v1327, %v1329
  %v1331 = vrot.slane %v1177, 2
  %v1332 = vsel %vm1247, %v1329, %v1331
  %v1333 = vrot.slane %v1180, 2
  %v1334 = vsel %vm1247, %v1331, %v1333
  %v1335 = vrot.slane %v1185, 2
  %v1336 = vsel %vm1247, %v1333, %v1335
  %v1337 = vrot.slane %v1188, 2
  %v1338 = vsel %vm1247, %v1335, %v1337
  %v1339 = vrot.slane %v1193, 2
  %v1340 = vsel %vm1247, %v1337, %v1339
  %v1341 = vrot.slane %v1196, 2
  %v1342 = vsel %vm1247, %v1339, %v1341
  %v1392 = vsel %vm1247, %v1341, %v1248
  %v1393 = vadd.f32 %v759, %v1250
  %v1394 = vadd.f32 %v762, %v1252
  %v1395 = vadd.f32 %v767, %v1254
  %v1396 = vadd.f32 %v770, %v1256
  %v1397 = vadd.f32 %v775, %v1258
  %v1398 = vadd.f32 %v778, %v1260
  %v1399 = vadd.f32 %v783, %v1262
  %v1400 = vadd.f32 %v786, %v1264
  %v1401 = vadd.f32 %v791, %v1266
  %v1402 = vadd.f32 %v794, %v1268
  %v1403 = vadd.f32 %v799, %v1270
  %v1404 = vadd.f32 %v802, %v1272
  %v1405 = vadd.f32 %v807, %v1274
  %v1406 = vadd.f32 %v810, %v1276
  %v1407 = vadd.f32 %v815, %v1278
  %v1408 = vadd.f32 %v818, %v1280
  %v1409 = vadd.f32 %v823, %v1282
  %v1410 = vadd.f32 %v826, %v1284
  %v1411 = vadd.f32 %v831, %v1286
  %v1412 = vadd.f32 %v834, %v1288
  %v1413 = vadd.f32 %v839, %v1290
  %v1414 = vadd.f32 %v842, %v1292
  %v1415 = vadd.f32 %v847, %v1294
  %v1416 = vadd.f32 %v850, %v1296
  %v1417 = vadd.f32 %v855, %v1298
  %v1418 = vadd.f32 %v858, %v1300
  %v1419 = vadd.f32 %v863, %v1302
  %v1420 = vadd.f32 %v866, %v1304
  %v1421 = vadd.f32 %v871, %v1306
  %v1422 = vadd.f32 %v874, %v1308
  %v1423 = vadd.f32 %v879, %v1310
  %v1424 = vadd.f32 %v882, %v1312
  %v1425 = vadd.f32 %v887, %v1314
  %v1426 = vadd.f32 %v890, %v1316
  %v1427 = vadd.f32 %v895, %v1318
  %v1428 = vadd.f32 %v898, %v1320
  %v1429 = vadd.f32 %v903, %v1322
  %v1430 = vadd.f32 %v906, %v1324
  %v1431 = vadd.f32 %v911, %v1326
  %v1432 = vadd.f32 %v914, %v1328
  %v1433 = vadd.f32 %v919, %v1330
  %v1434 = vadd.f32 %v922, %v1332
  %v1435 = vadd.f32 %v927, %v1334
  %v1436 = vadd.f32 %v930, %v1336
  %v1437 = vadd.f32 %v935, %v1338
  %v1438 = vadd.f32 %v938, %v1340
  %v1439 = vadd.f32 %v943, %v1342
  %v1440 = vadd.f32 %v946, %v1392
  %v1441 = vld [vmem:[%s2] sm:$0x1]
  %v1443 = vlaneseq
  %v1444 = vshrl.u32 %v1443, 7
  %v1445 = vsub.s32 0, %v1444
  %v1446 = vrot.slane %v1441, %v1445
  %v1448 = vadd.f32 %v1393, %v1446
  %v1449 = vadd.f32 %v1394, %v1446
  %v1450 = vadd.f32 %v1395, %v1446
  %v1451 = vadd.f32 %v1396, %v1446
  %v1452 = vadd.f32 %v1397, %v1446
  %v1453 = vadd.f32 %v1398, %v1446
  %v1454 = vadd.f32 %v1399, %v1446
  %v1455 = vadd.f32 %v1400, %v1446
  %v1456 = vadd.f32 %v1401, %v1446
  %v1457 = vadd.f32 %v1402, %v1446
  %v1458 = vadd.f32 %v1403, %v1446
  %v1459 = vadd.f32 %v1404, %v1446
  %v1460 = vadd.f32 %v1405, %v1446
  %v1461 = vadd.f32 %v1406, %v1446
  %v1462 = vadd.f32 %v1407, %v1446
  %v1463 = vadd.f32 %v1408, %v1446
  %v1464 = vadd.f32 %v1409, %v1446
  %v1465 = vadd.f32 %v1410, %v1446
  %v1466 = vadd.f32 %v1411, %v1446
  %v1467 = vadd.f32 %v1412, %v1446
  %v1468 = vadd.f32 %v1413, %v1446
  %v1469 = vadd.f32 %v1414, %v1446
  %v1470 = vadd.f32 %v1415, %v1446
  %v1471 = vadd.f32 %v1416, %v1446
  %v1472 = vadd.f32 %v1417, %v1446
  %v1473 = vadd.f32 %v1418, %v1446
  %v1474 = vadd.f32 %v1419, %v1446
  %v1475 = vadd.f32 %v1420, %v1446
  %v1476 = vadd.f32 %v1421, %v1446
  %v1477 = vadd.f32 %v1422, %v1446
  %v1478 = vadd.f32 %v1423, %v1446
  %v1479 = vadd.f32 %v1424, %v1446
  %v1480 = vadd.f32 %v1425, %v1446
  %v1481 = vadd.f32 %v1426, %v1446
  %v1482 = vadd.f32 %v1427, %v1446
  %v1483 = vadd.f32 %v1428, %v1446
  %v1484 = vadd.f32 %v1429, %v1446
  %v1485 = vadd.f32 %v1430, %v1446
  %v1486 = vadd.f32 %v1431, %v1446
  %v1487 = vadd.f32 %v1432, %v1446
  %v1488 = vadd.f32 %v1433, %v1446
  %v1489 = vadd.f32 %v1434, %v1446
  %v1490 = vadd.f32 %v1435, %v1446
  %v1491 = vadd.f32 %v1436, %v1446
  %v1492 = vadd.f32 %v1437, %v1446
  %v1493 = vadd.f32 %v1438, %v1446
  %v1494 = vadd.f32 %v1439, %v1446
  %v1495 = vadd.f32 %v1440, %v1446
  %v1496 = vmax.f32 %v1448, 0.0
  %v1497 = vmax.f32 %v1449, 0.0
  %v1498 = vmax.f32 %v1450, 0.0
  %v1499 = vmax.f32 %v1451, 0.0
  %v1500 = vmax.f32 %v1452, 0.0
  %v1501 = vmax.f32 %v1453, 0.0
  %v1502 = vmax.f32 %v1454, 0.0
  %v1503 = vmax.f32 %v1455, 0.0
  %v1504 = vmax.f32 %v1456, 0.0
  %v1505 = vmax.f32 %v1457, 0.0
  %v1506 = vmax.f32 %v1458, 0.0
  %v1507 = vmax.f32 %v1459, 0.0
  %v1508 = vmax.f32 %v1460, 0.0
  %v1509 = vmax.f32 %v1461, 0.0
  %v1510 = vmax.f32 %v1462, 0.0
  %v1511 = vmax.f32 %v1463, 0.0
  %v1512 = vmax.f32 %v1464, 0.0
  %v1513 = vmax.f32 %v1465, 0.0
  %v1514 = vmax.f32 %v1466, 0.0
  %v1515 = vmax.f32 %v1467, 0.0
  %v1516 = vmax.f32 %v1468, 0.0
  %v1517 = vmax.f32 %v1469, 0.0
  %v1518 = vmax.f32 %v1470, 0.0
  %v1519 = vmax.f32 %v1471, 0.0
  %v1520 = vmax.f32 %v1472, 0.0
  %v1521 = vmax.f32 %v1473, 0.0
  %v1522 = vmax.f32 %v1474, 0.0
  %v1523 = vmax.f32 %v1475, 0.0
  %v1524 = vmax.f32 %v1476, 0.0
  %v1525 = vmax.f32 %v1477, 0.0
  %v1526 = vmax.f32 %v1478, 0.0
  %v1527 = vmax.f32 %v1479, 0.0
  %v1528 = vmax.f32 %v1480, 0.0
  %v1529 = vmax.f32 %v1481, 0.0
  %v1530 = vmax.f32 %v1482, 0.0
  %v1531 = vmax.f32 %v1483, 0.0
  %v1532 = vmax.f32 %v1484, 0.0
  %v1533 = vmax.f32 %v1485, 0.0
  %v1534 = vmax.f32 %v1486, 0.0
  %v1535 = vmax.f32 %v1487, 0.0
  %v1536 = vmax.f32 %v1488, 0.0
  %v1537 = vmax.f32 %v1489, 0.0
  %v1538 = vmax.f32 %v1490, 0.0
  %v1539 = vmax.f32 %v1491, 0.0
  %v1540 = vmax.f32 %v1492, 0.0
  %v1541 = vmax.f32 %v1493, 0.0
  %v1542 = vmax.f32 %v1494, 0.0
  %v1543 = vmax.f32 %v1495, 0.0
  %v1544 = vpack.c.bf16 %v1497, %v1496
  %v1545 = vpack.c.bf16 %v1499, %v1498
  %v1546 = vpack.c.bf16 %v1501, %v1500
  %v1547 = vpack.c.bf16 %v1503, %v1502
  %v1548 = vpack.c.bf16 %v1505, %v1504
  %v1549 = vpack.c.bf16 %v1507, %v1506
  %v1550 = vpack.c.bf16 %v1509, %v1508
  %v1551 = vpack.c.bf16 %v1511, %v1510
  %v1552 = vpack.c.bf16 %v1513, %v1512
  %v1553 = vpack.c.bf16 %v1515, %v1514
  %v1554 = vpack.c.bf16 %v1517, %v1516
  %v1555 = vpack.c.bf16 %v1519, %v1518
  %v1556 = vpack.c.bf16 %v1521, %v1520
  %v1557 = vpack.c.bf16 %v1523, %v1522
  %v1558 = vpack.c.bf16 %v1525, %v1524
  %v1559 = vpack.c.bf16 %v1527, %v1526
  %v1560 = vpack.c.bf16 %v1529, %v1528
  %v1561 = vpack.c.bf16 %v1531, %v1530
  %v1562 = vpack.c.bf16 %v1533, %v1532
  %v1563 = vpack.c.bf16 %v1535, %v1534
  %v1564 = vpack.c.bf16 %v1537, %v1536
  %v1565 = vpack.c.bf16 %v1539, %v1538
  %v1566 = vpack.c.bf16 %v1541, %v1540
  %v1567 = vpack.c.bf16 %v1543, %v1542
  %v1592 = vunpack.c.l.b16 %v1544
  %v1593 = vunpack.c.h.b16 %v1544
  %v1594 = vunpack.c.l.b16 %v1545
  %v1595 = vunpack.c.h.b16 %v1545
  %v1596 = vunpack.c.l.b16 %v1546
  %v1597 = vunpack.c.h.b16 %v1546
  %v1598 = vunpack.c.l.b16 %v1547
  %v1599 = vunpack.c.h.b16 %v1547
  %v1600 = vunpack.c.l.b16 %v1548
  %v1601 = vunpack.c.h.b16 %v1548
  %v1602 = vunpack.c.l.b16 %v1549
  %v1603 = vunpack.c.h.b16 %v1549
  %v1604 = vunpack.c.l.b16 %v1550
  %v1605 = vunpack.c.h.b16 %v1550
  %v1606 = vunpack.c.l.b16 %v1551
  %v1607 = vunpack.c.h.b16 %v1551
  %v1608 = vunpack.c.l.b16 %v1552
  %v1609 = vunpack.c.h.b16 %v1552
  %v1610 = vunpack.c.l.b16 %v1553
  %v1611 = vunpack.c.h.b16 %v1553
  %v1612 = vunpack.c.l.b16 %v1554
  %v1613 = vunpack.c.h.b16 %v1554
  %v1614 = vunpack.c.l.b16 %v1555
  %v1615 = vunpack.c.h.b16 %v1555
  %v1616 = vunpack.c.l.b16 %v1556
  %v1617 = vunpack.c.h.b16 %v1556
  %v1618 = vunpack.c.l.b16 %v1557
  %v1619 = vunpack.c.h.b16 %v1557
  %v1620 = vunpack.c.l.b16 %v1558
  %v1621 = vunpack.c.h.b16 %v1558
  %v1622 = vunpack.c.l.b16 %v1559
  %v1623 = vunpack.c.h.b16 %v1559
  %v1624 = vunpack.c.l.b16 %v1560
  %v1625 = vunpack.c.h.b16 %v1560
  %v1626 = vunpack.c.l.b16 %v1561
  %v1627 = vunpack.c.h.b16 %v1561
  %v1628 = vunpack.c.l.b16 %v1562
  %v1629 = vunpack.c.h.b16 %v1562
  %v1630 = vunpack.c.l.b16 %v1563
  %v1631 = vunpack.c.h.b16 %v1563
  %v1632 = vunpack.c.l.b16 %v1564
  %v1633 = vunpack.c.h.b16 %v1564
  %v1634 = vunpack.c.l.b16 %v1565
  %v1635 = vunpack.c.h.b16 %v1565
  %v1636 = vunpack.c.l.b16 %v1566
  %v1637 = vunpack.c.h.b16 %v1566
  %v1638 = vunpack.c.l.b16 %v1567
  %v1639 = vunpack.c.h.b16 %v1567
  %v1640 = vpack.c.b16 %v1592, %v1592
  %v1641 = vpack.c.b16 %v1593, %v1593
  %v1642 = vpack.c.b16 %v1594, %v1594
  %v1643 = vpack.c.b16 %v1595, %v1595
  %v1644 = vpack.c.b16 %v1596, %v1596
  %v1645 = vpack.c.b16 %v1597, %v1597
  %v1646 = vpack.c.b16 %v1598, %v1598
  %v1647 = vpack.c.b16 %v1599, %v1599
  %v1648 = vpack.c.b16 %v1600, %v1600
  %v1649 = vpack.c.b16 %v1601, %v1601
  %v1650 = vpack.c.b16 %v1602, %v1602
  %v1651 = vpack.c.b16 %v1603, %v1603
  %v1652 = vpack.c.b16 %v1604, %v1604
  %v1653 = vpack.c.b16 %v1605, %v1605
  %v1654 = vpack.c.b16 %v1606, %v1606
  %v1655 = vpack.c.b16 %v1607, %v1607
  %v1656 = vpack.c.b16 %v1608, %v1608
  %v1657 = vpack.c.b16 %v1609, %v1609
  %v1658 = vpack.c.b16 %v1610, %v1610
  %v1659 = vpack.c.b16 %v1611, %v1611
  %v1660 = vpack.c.b16 %v1612, %v1612
  %v1661 = vpack.c.b16 %v1613, %v1613
  %v1662 = vpack.c.b16 %v1614, %v1614
  %v1663 = vpack.c.b16 %v1615, %v1615
  %v1664 = vpack.c.b16 %v1616, %v1616
  %v1665 = vpack.c.b16 %v1617, %v1617
  %v1666 = vpack.c.b16 %v1618, %v1618
  %v1667 = vpack.c.b16 %v1619, %v1619
  %v1668 = vpack.c.b16 %v1620, %v1620
  %v1669 = vpack.c.b16 %v1621, %v1621
  %v1670 = vpack.c.b16 %v1622, %v1622
  %v1671 = vpack.c.b16 %v1623, %v1623
  %v1672 = vpack.c.b16 %v1624, %v1624
  %v1673 = vpack.c.b16 %v1625, %v1625
  %v1674 = vpack.c.b16 %v1626, %v1626
  %v1675 = vpack.c.b16 %v1627, %v1627
  %v1676 = vpack.c.b16 %v1628, %v1628
  %v1677 = vpack.c.b16 %v1629, %v1629
  %v1678 = vpack.c.b16 %v1630, %v1630
  %v1679 = vpack.c.b16 %v1631, %v1631
  %v1680 = vpack.c.b16 %v1632, %v1632
  %v1681 = vpack.c.b16 %v1633, %v1633
  %v1682 = vpack.c.b16 %v1634, %v1634
  %v1683 = vpack.c.b16 %v1635, %v1635
  %v1684 = vpack.c.b16 %v1636, %v1636
  %v1685 = vpack.c.b16 %v1637, %v1637
  %v1686 = vpack.c.b16 %v1638, %v1638
  %v1687 = vpack.c.b16 %v1639, %v1639
  %1736 = vst [vmem:[%s3] sm:$0xf] %v1640
  %1737 = vst [vmem:[%s3 + $0x4] sm:$0xf] %v1641
  %1738 = vst [vmem:[%s3 + $0x8] sm:$0xf] %v1642
  %1739 = vst [vmem:[%s3 + $0xc] sm:$0xf] %v1643
  %1740 = vst [vmem:[%s3 + $0x10] sm:$0xf] %v1644
  %1741 = vst [vmem:[%s3 + $0x14] sm:$0xf] %v1645
  %1742 = vst [vmem:[%s3 + $0x18] sm:$0xf] %v1646
  %1743 = vst [vmem:[%s3 + $0x1c] sm:$0xf] %v1647
  %1744 = vst [vmem:[%s3 + $0x20] sm:$0xf] %v1648
  %1745 = vst [vmem:[%s3 + $0x24] sm:$0xf] %v1649
  %1746 = vst [vmem:[%s3 + $0x28] sm:$0xf] %v1650
  %1747 = vst [vmem:[%s3 + $0x2c] sm:$0xf] %v1651
  %1748 = vst [vmem:[%s3 + $0x30] sm:$0xf] %v1652
  %1749 = vst [vmem:[%s3 + $0x34] sm:$0xf] %v1653
  %1750 = vst [vmem:[%s3 + $0x38] sm:$0xf] %v1654
  %1751 = vst [vmem:[%s3 + $0x3c] sm:$0xf] %v1655
  %1752 = vst [vmem:[%s3 + $0x40] sm:$0xf] %v1656
  %1753 = vst [vmem:[%s3 + $0x44] sm:$0xf] %v1657
  %1754 = vst [vmem:[%s3 + $0x48] sm:$0xf] %v1658
  %1755 = vst [vmem:[%s3 + $0x4c] sm:$0xf] %v1659
  %1756 = vst [vmem:[%s3 + $0x50] sm:$0xf] %v1660
  %1757 = vst [vmem:[%s3 + $0x54] sm:$0xf] %v1661
  %1758 = vst [vmem:[%s3 + $0x58] sm:$0xf] %v1662
  %1759 = vst [vmem:[%s3 + $0x5c] sm:$0xf] %v1663
  %1760 = vst [vmem:[%s3 + $0x60] sm:$0xf] %v1664
  %1761 = vst [vmem:[%s3 + $0x64] sm:$0xf] %v1665
  %1762 = vst [vmem:[%s3 + $0x68] sm:$0xf] %v1666
  %1763 = vst [vmem:[%s3 + $0x6c] sm:$0xf] %v1667
  %1764 = vst [vmem:[%s3 + $0x70] sm:$0xf] %v1668
  %1765 = vst [vmem:[%s3 + $0x74] sm:$0xf] %v1669
  %1766 = vst [vmem:[%s3 + $0x78] sm:$0xf] %v1670
  %1767 = vst [vmem:[%s3 + $0x7c] sm:$0xf] %v1671
  %1768 = vst [vmem:[%s3 + $0x80] sm:$0xf] %v1672
  %1769 = vst [vmem:[%s3 + $0x84] sm:$0xf] %v1673
  %1770 = vst [vmem:[%s3 + $0x88] sm:$0xf] %v1674
  %1771 = vst [vmem:[%s3 + $0x8c] sm:$0xf] %v1675
  %1772 = vst [vmem:[%s3 + $0x90] sm:$0xf] %v1676
  %1773 = vst [vmem:[%s3 + $0x94] sm:$0xf] %v1677
  %1774 = vst [vmem:[%s3 + $0x98] sm:$0xf] %v1678
  %1775 = vst [vmem:[%s3 + $0x9c] sm:$0xf] %v1679
  %1776 = vst [vmem:[%s3 + $0xa0] sm:$0xf] %v1680
  %1777 = vst [vmem:[%s3 + $0xa4] sm:$0xf] %v1681
  %1778 = vst [vmem:[%s3 + $0xa8] sm:$0xf] %v1682
  %1779 = vst [vmem:[%s3 + $0xac] sm:$0xf] %v1683
  %1780 = vst [vmem:[%s3 + $0xb0] sm:$0xf] %v1684
  %1781 = vst [vmem:[%s3 + $0xb4] sm:$0xf] %v1685
  %1782 = vst [vmem:[%s3 + $0xb8] sm:$0xf] %v1686
  %1783 = vst [vmem:[%s3 + $0xbc] sm:$0xf] %v1687
  // Predicated region
  $region14: #{conv3x3_bn_act.1} parent=0 // pred_check
    _
  $region15: #{conv3x3_bn_act.1} parent=0 // pred_check_branch
    %1785 = sbr.rel (0) target = $region17
  $region16: #{conv3x3_bn_act.1} parent=0 // pred_region
    _
  $region17: #{conv3x3_bn_act.1} parent=0 // pred_fallthru
    _
  // Predicated region
  $region18: #{conv3x3_bn_act.1} parent=0 // pred_check
    _
  $region19: #{conv3x3_bn_act.1} parent=0 // pred_check_branch
    %1787 = sbr.rel (0) target = $region21
  $region20: #{conv3x3_bn_act.1} parent=0 // pred_region
    _
  $region21: #{conv3x3_bn_act.1} parent=0 // pred_fallthru
    _

</llo_original>
